<compile_context>
chip_gen: v7x
topology: tpu7x:2x2x1
jax: 0.10.0
libtpu: 0.0.40
codegen_flags: <defaults>
</compile_context>

<pallas_src>
import jax
import jax.numpy as jnp
from jax.experimental import pallas as pl
from jax.experimental.pallas import tpu as pltpu

BN_EPS = 1e-5
_COL0 = 8          # sublane-aligned first interior column of the halo scratch


# ----------------------------------------------------------------------------
# Row-tile size heuristic
# ----------------------------------------------------------------------------
def _pick_row_tile(Ho, W, hidden, stride, live_budget=1 << 20):
    """Largest divisor of Ho whose per-tile hidden slab stays ~register friendly."""
    per_row = (W + 2) * hidden * 4 * (2 + stride)   # slab + taps + acc (rough, f32)
    cap = max(1, min(Ho, live_budget // max(per_row, 1)))
    for t in range(int(cap), 0, -1):
        if Ho % t == 0:
            return t
    return 1


# ----------------------------------------------------------------------------
# Kernel
# ----------------------------------------------------------------------------
def _make_kernel(*, H, W, Ho, Wo, cin, hidden, cout, stride, expand,
                 use_shortcut, th_out, slab, mm_dtype):
    """Fused InvertedResidual kernel: one (image, output-row-tile) per grid step."""
    S = stride
    TH_IN = (th_out - 1) * S + 3          # padded rows the depthwise reads per tile
    WPAD = W + _COL0 + 1                  # scratch width (left pad .. right halo)

    def kernel(*refs):
        if expand:
            (x_ref, w1_ref, s1_ref, b1_ref,
             dw_ref, s2_ref, b2_ref,
             w3_ref, s3_ref, b3_ref,
             o_ref, pad_ref) = refs
        else:
            (x_ref,
             dw_ref, s2_ref, b2_ref,
             w3_ref, s3_ref, b3_ref,
             o_ref, pad_ref) = refs

        r = pl.program_id(1)

        # ---- zero only the halo border, once per image (never rewritten later)
        @pl.when(r == 0)
        def _():
            zrow = jnp.zeros((1, WPAD, hidden), jnp.float32)
            pad_ref[0:1, :, :] = zrow                       # top halo row
            pad_ref[H + 1:H + 2, :, :] = zrow               # bottom halo row
            zcol = jnp.zeros((H + 2, 1, hidden), jnp.float32)
            pad_ref[:, _COL0 - 1:_COL0, :] = zcol           # left halo column
            pad_ref[:, _COL0 + W:_COL0 + W + 1, :] = zcol   # right halo column

        # ---- input rows owned by this tile (clamped so the last tile re-uses
        #      already-written rows instead of reading out of bounds)
        start = jnp.minimum(r * (th_out * S), H - slab)
        xs = x_ref[0, pl.ds(start, slab), :, :]             # (slab, W, cin)

        # ---- 1x1 expansion conv + BN + ReLU6 (absent when expansion_ratio==1)
        if expand:
            h = jnp.dot(xs.reshape(slab * W, cin), w1_ref[...],
                        preferred_element_type=jnp.float32)
            h = jnp.clip(h * s1_ref[...] + b1_ref[...], 0.0, 6.0)
        else:
            h = xs.reshape(slab * W, cin).astype(jnp.float32)   # hidden == cin

        # sublane-aligned interior store into the carried halo scratch
        pad_ref[pl.ds(start + 1, slab), _COL0:_COL0 + W, :] = \
            h.reshape(slab, W, hidden)

        # ---- 3x3 depthwise conv (padding=1, groups=hidden) + BN + ReLU6
        dw = dw_ref[...]              # (9, hidden): loaded once, sliced in regs
        s2 = s2_ref[0, :]
        b2 = b2_ref[0, :]
        row_lo = r * (th_out * S)

        acc = None
        if S == 1:
            # one slab read, 9 in-register shifted slices (no VMEM re-reads)
            hs = pad_ref[pl.ds(row_lo, TH_IN), _COL0 - 1:_COL0 + W + 1, :]
            for kh in range(3):
                for kw in range(3):
                    tap = hs[kh:kh + th_out, kw:kw + Wo, :]
                    term = tap * dw[3 * kh + kw]
                    acc = term if acc is None else acc + term
        else:
            # strided taps straight from the scratch (stride-2 path)
            for kh in range(3):
                for kw in range(3):
                    tap = pad_ref[pl.ds(row_lo + kh, th_out, stride=S),
                                  pl.ds(_COL0 - 1 + kw, Wo, stride=S), :]
                    term = tap * dw[3 * kh + kw]
                    acc = term if acc is None else acc + term

        d = jnp.clip(acc * s2 + b2, 0.0, 6.0)                # (th_out, Wo, hidden)

        # ---- 1x1 projection conv + BN (linear bottleneck, no activation)
        y = jnp.dot(d.reshape(th_out * Wo, hidden).astype(mm_dtype), w3_ref[...],
                    preferred_element_type=jnp.float32)
        y = y * s3_ref[...] + b3_ref[...]

        if use_shortcut:                                     # stride==1, cin==cout
            xsc = x_ref[0, pl.ds(r * th_out, th_out), :, :]
            y = y + xsc.reshape(th_out * Wo, cin).astype(jnp.float32)

        o_ref[...] = y.reshape(1, th_out, Wo, cout).astype(o_ref.dtype)

    return kernel


# ----------------------------------------------------------------------------
# NHWC wrapper (native entry point — keep activations NHWC across a network)
# ----------------------------------------------------------------------------
def inverted_residual_pallas_nhwc(x_nhwc, params, *, stride, expansion_ratio,
                                  compute_dtype=jnp.bfloat16, row_tile=None):
    N, H, W, cin = x_nhwc.shape
    hidden = cin * expansion_ratio
    cout = params['w3'].shape[1]
    expand = expansion_ratio != 1
    use_shortcut = (stride == 1) and (cin == cout)
    Ho = (H + 2 - 3) // stride + 1
    Wo = (W + 2 - 3) // stride + 1

    th_out = row_tile if row_tile is not None else _pick_row_tile(Ho, W, hidden, stride)
    if Ho % th_out != 0:
        raise ValueError(f"row_tile={th_out} must divide Ho={Ho}")
    R = Ho // th_out
    # expansion rows computed per tile: its core rows (+1 bottom halo if stride==1)
    slab = min(th_out * stride + max(2 - stride, 0), H)

    mm_dtype = compute_dtype
    dsz = 2 if mm_dtype == jnp.bfloat16 else 4
    x = x_nhwc.astype(mm_dtype)

    def fold_bn(bn):
        g, b, m, v = bn
        scale = g / jnp.sqrt(v + BN_EPS)
        bias = b - m * scale
        return (scale.reshape(1, -1).astype(jnp.float32),
                bias.reshape(1, -1).astype(jnp.float32))

    def full_spec(arr):
        idx = (0,) * arr.ndim
        return pl.BlockSpec(arr.shape, lambda n, r, _idx=idx: _idx)

    inputs = [x]
    in_specs = [pl.BlockSpec((1, H, W, cin), lambda n, r: (n, 0, 0, 0))]

    if expand:
        s1, b1 = fold_bn(params['bn1'])
        w1 = params['w1'].astype(mm_dtype)
        for a in (w1, s1, b1):
            inputs.append(a)
            in_specs.append(full_spec(a))

    s2, b2 = fold_bn(params['bn2'])
    dw = params['dw'].reshape(9, hidden).astype(jnp.float32)   # (kh*3+kw, channel)
    for a in (dw, s2, b2):
        inputs.append(a)
        in_specs.append(full_spec(a))

    s3, b3 = fold_bn(params['bn3'])
    w3 = params['w3'].astype(mm_dtype)
    for a in (w3, s3, b3):
        inputs.append(a)
        in_specs.append(full_spec(a))

    kernel = _make_kernel(H=H, W=W, Ho=Ho, Wo=Wo, cin=cin, hidden=hidden,
                          cout=cout, stride=stride, expand=expand,
                          use_shortcut=use_shortcut, th_out=th_out, slab=slab,
                          mm_dtype=mm_dtype)

    # ---- explicit VMEM budget (covers v5e 16 MiB default and v7x 64 MiB phys)
    pad_bytes = (H + 2) * (W + _COL0 + 1) * hidden * 4
    io_bytes = 2 * (H * W * cin * dsz + th_out * Wo * cout * 4)   # double-buffered
    wgt_bytes = 2 * sum(int(a.size) * a.dtype.itemsize for a in inputs[1:])
    vmem_limit = int(min(max(pad_bytes + io_bytes + wgt_bytes + (8 << 20),
                             32 << 20), 56 << 20))

    flops = N * (2 * 9 * Ho * Wo * hidden + 2 * Ho * Wo * hidden * cout
                 + (2 * H * W * cin * hidden if expand else 0))
    bytes_accessed = (int(x.size) * dsz + N * Ho * Wo * cout * 4
                      + sum(int(a.size) * a.dtype.itemsize for a in inputs[1:]))

    out_nhwc = pl.pallas_call(
        kernel,
        out_shape=jax.ShapeDtypeStruct((N, Ho, Wo, cout), jnp.float32),
        grid_spec=pltpu.PrefetchScalarGridSpec(
            num_scalar_prefetch=0,
            grid=(N, R),
            in_specs=in_specs,
            out_specs=pl.BlockSpec((1, th_out, Wo, cout),
                                   lambda n, r: (n, r, 0, 0)),
            scratch_shapes=[pltpu.VMEM((H + 2, W + _COL0 + 1, hidden),
                                       jnp.float32)],
        ),
        compiler_params=pltpu.CompilerParams(
            dimension_semantics=("parallel", "arbitrary"),
            vmem_limit_bytes=vmem_limit),
        cost_estimate=pl.CostEstimate(flops=int(flops), transcendentals=0,
                                      bytes_accessed=int(bytes_accessed)),
    )(*inputs)

    return out_nhwc


# ----------------------------------------------------------------------------
# NCHW adapter (matches the PyTorch module I/O; whole nets should stay NHWC)
# ----------------------------------------------------------------------------
def inverted_residual_pallas(x_nchw, params, *, stride, expansion_ratio,
                             compute_dtype=jnp.bfloat16, row_tile=None):
    x = jnp.transpose(x_nchw, (0, 2, 3, 1))                  # NCHW -> NHWC
    out = inverted_residual_pallas_nhwc(x, params, stride=stride,
                                        expansion_ratio=expansion_ratio,
                                        compute_dtype=compute_dtype,
                                        row_tile=row_tile)
    return jnp.transpose(out, (0, 3, 1, 2))                  # NHWC -> NCHW


# ----------------------------------------------------------------------------
# Deterministic parameter init (shapes follow the PyTorch module __init__)
# ----------------------------------------------------------------------------
def init_params(key, in_ch, out_ch, expansion_ratio):
    hidden = in_ch * expansion_ratio
    ks = iter(jax.random.split(key, 16))

    def bn_params(c):
        g = 1.0 + 0.1 * jax.random.normal(next(ks), (c,), jnp.float32)
        b = 0.1 * jax.random.normal(next(ks), (c,), jnp.float32)
        m = 0.1 * jax.random.normal(next(ks), (c,), jnp.float32)
        v = 0.5 + 0.5 * jnp.abs(jax.random.normal(next(ks), (c,), jnp.float32))
        return (g, b, m, v)

    p = {}
    if expansion_ratio != 1:
        p['w1'] = 0.2 * jax.random.normal(next(ks), (in_ch, hidden), jnp.float32)
        p['bn1'] = bn_params(hidden)
    p['dw'] = 0.2 * jax.random.normal(next(ks), (3, 3, hidden), jnp.float32)
    p['bn2'] = bn_params(hidden)
    p['w3'] = 0.2 * jax.random.normal(next(ks), (hidden, out_ch), jnp.float32)
    p['bn3'] = bn_params(out_ch)
    return p


# ----------------------------------------------------------------------------
# Pure-JAX reference (mirrors the PyTorch forward with inference-mode BN)
# ----------------------------------------------------------------------------
def inverted_residual_reference(x, params, *, stride, expansion_ratio):
    N, cin, H, W = x.shape
    hidden = cin * expansion_ratio
    cout = params['w3'].shape[1]
    use_shortcut = (stride == 1) and (cin == cout)

    def conv(z, w, s=1, p=0, groups=1):
        return jax.lax.conv_general_dilated(
            z, w, (s, s), [(p, p), (p, p)],
            dimension_numbers=('NCHW', 'OIHW', 'NCHW'),
            feature_group_count=groups)

    def bn(z, prm):
        g, b, m, v = prm
        inv = (g / jnp.sqrt(v + BN_EPS))[None, :, None, None]
        return (z - m[None, :, None, None]) * inv + b[None, :, None, None]

    h = x
    if expansion_ratio != 1:
        w1 = params['w1'].T.reshape(hidden, cin, 1, 1)
        h = jnp.clip(bn(conv(h, w1), params['bn1']), 0.0, 6.0)
    wd = jnp.transpose(params['dw'], (2, 0, 1)).reshape(hidden, 1, 3, 3)
    h = jnp.clip(bn(conv(h, wd, s=stride, p=1, groups=hidden), params['bn2']),
                 0.0, 6.0)
    w3 = params['w3'].T.reshape(cout, hidden, 1, 1)
    h = bn(conv(h, w3), params['bn3'])
    if use_shortcut:
        h = h + x
    return h


# ----------------------------------------------------------------------------
if __name__ == "__main__":
    key = jax.random.PRNGKey(0)
    kx, kp1, kp2 = jax.random.split(key, 3)

    x = jax.random.normal(kx, (2, 4, 16, 16), jnp.float32)   # NCHW like PyTorch

    # Config A: expansion=4, stride=1, in_ch == out_ch -> shortcut.
    #   (i)  f32 path, explicit row_tile=4 -> exercises the multi-row-tile /
    #        carried-halo scratch logic (R = 4 tiles per image).
    #   (ii) default row tile, bf16 matmul path (looser tolerance).
    pA = init_params(kp1, 4, 4, 4)
    refA = inverted_residual_reference(x, pA, stride=1, expansion_ratio=4)
    outA = inverted_residual_pallas(x, pA, stride=1, expansion_ratio=4,
                                    compute_dtype=jnp.float32, row_tile=4)
    outA16 = inverted_residual_pallas(x, pA, stride=1, expansion_ratio=4,
                                      compute_dtype=jnp.bfloat16)

    # Config B: expansion=1 (no expansion conv), stride=1, in_ch != out_ch.
    pB = init_params(kp2, 4, 8, 1)
    refB = inverted_residual_reference(x, pB, stride=1, expansion_ratio=1)
    outB = inverted_residual_pallas(x, pB, stride=1, expansion_ratio=1,
                                    compute_dtype=jnp.float32)

    jax.block_until_ready((outA, outA16, outB))

    assert outA.shape == (2, 4, 16, 16), outA.shape
    assert outB.shape == (2, 8, 16, 16), outB.shape
    assert jnp.allclose(outA, refA, atol=1e-3, rtol=1e-3)
    assert jnp.allclose(outB, refB, atol=1e-3, rtol=1e-3)
    assert jnp.allclose(outA16, refA, atol=6e-2, rtol=6e-2)   # bf16 matmul path

    print("KERNEL_OK")
</pallas_src>

<mosaic_0001>
module attributes {stable_mosaic.version = 11 : i64} {
  func.func @kernel(%arg0: i32, %arg1: i32, %arg2: memref<1x16x16x4xf32, #tpu.memory_space<vmem>>, %arg3: memref<4x16xf32, #tpu.memory_space<vmem>>, %arg4: memref<1x16xf32, #tpu.memory_space<vmem>>, %arg5: memref<1x16xf32, #tpu.memory_space<vmem>>, %arg6: memref<9x16xf32, #tpu.memory_space<vmem>>, %arg7: memref<1x16xf32, #tpu.memory_space<vmem>>, %arg8: memref<1x16xf32, #tpu.memory_space<vmem>>, %arg9: memref<16x4xf32, #tpu.memory_space<vmem>>, %arg10: memref<1x4xf32, #tpu.memory_space<vmem>>, %arg11: memref<1x4xf32, #tpu.memory_space<vmem>>, %arg12: memref<1x4x16x4xf32, #tpu.memory_space<vmem>>, %arg13: memref<18x25x16xf32, #tpu.memory_space<vmem>>) attributes {dimension_semantics = [#tpu.dimension_semantics<parallel>, #tpu.dimension_semantics<arbitrary>], iteration_bounds = array<i64: 2, 4>, scalar_prefetch = 0 : i64, scratch_operands = 1 : i64, tpu.core_type = #tpu.core_type<tc>, window_params = [{transform_indices = @transform_0, window_bounds = array<i64: 1, 16, 16, 4>}, {pipeline_mode = #tpu.pipeline_mode<synchronous>, transform_indices = @transform_1, window_bounds = array<i64: 4, 16>}, {pipeline_mode = #tpu.pipeline_mode<synchronous>, transform_indices = @transform_2, window_bounds = array<i64: 1, 16>}, {pipeline_mode = #tpu.pipeline_mode<synchronous>, transform_indices = @transform_3, window_bounds = array<i64: 1, 16>}, {pipeline_mode = #tpu.pipeline_mode<synchronous>, transform_indices = @transform_4, window_bounds = array<i64: 9, 16>}, {pipeline_mode = #tpu.pipeline_mode<synchronous>, transform_indices = @transform_5, window_bounds = array<i64: 1, 16>}, {pipeline_mode = #tpu.pipeline_mode<synchronous>, transform_indices = @transform_6, window_bounds = array<i64: 1, 16>}, {pipeline_mode = #tpu.pipeline_mode<synchronous>, transform_indices = @transform_7, window_bounds = array<i64: 16, 4>}, {pipeline_mode = #tpu.pipeline_mode<synchronous>, transform_indices = @transform_8, window_bounds = array<i64: 1, 4>}, {pipeline_mode = #tpu.pipeline_mode<synchronous>, transform_indices = @transform_9, window_bounds = array<i64: 1, 4>}, {transform_indices = @transform_10, window_bounds = array<i64: 1, 4, 16, 4>}]} {
    %c0_i32 = arith.constant 0 : i32
    %0 = arith.cmpi eq, %arg1, %c0_i32 : i32
    %1 = arith.extui %0 : i1 to i32
    %c0_i32_0 = arith.constant 0 : i32
    %2 = arith.cmpi ne, %1, %c0_i32_0 : i32
    scf.if %2 {
      %cst_37 = arith.constant 0.000000e+00 : f32
      %122 = vector.broadcast %cst_37 : f32 to vector<1x25x16xf32>
      %c0_38 = arith.constant 0 : index
      %c0_39 = arith.constant 0 : index
      %c0_40 = arith.constant 0 : index
      %123 = vector.load %arg13[%c0_38, %c0_39, %c0_40] : memref<18x25x16xf32, #tpu.memory_space<vmem>>, vector<1x25x16xf32>
      tpu.vector_store %arg13[%c0_38, %c0_39, %c0_40], %122 {strides = array<i32>} : memref<18x25x16xf32, #tpu.memory_space<vmem>>, vector<1x25x16xf32>,
      %c17 = arith.constant 17 : index
      %c0_41 = arith.constant 0 : index
      %c0_42 = arith.constant 0 : index
      %124 = vector.load %arg13[%c17, %c0_41, %c0_42] : memref<18x25x16xf32, #tpu.memory_space<vmem>>, vector<1x25x16xf32>
      tpu.vector_store %arg13[%c17, %c0_41, %c0_42], %122 {strides = array<i32>} : memref<18x25x16xf32, #tpu.memory_space<vmem>>, vector<1x25x16xf32>,
      %cst_43 = arith.constant 0.000000e+00 : f32
      %125 = vector.broadcast %cst_43 : f32 to vector<18x1x16xf32>
      %c0_44 = arith.constant 0 : index
      %c7_45 = arith.constant 7 : index
      %c0_46 = arith.constant 0 : index
      %126 = vector.load %arg13[%c0_44, %c7_45, %c0_46] : memref<18x25x16xf32, #tpu.memory_space<vmem>>, vector<18x1x16xf32>
      tpu.vector_store %arg13[%c0_44, %c7_45, %c0_46], %125 {strides = array<i32>} : memref<18x25x16xf32, #tpu.memory_space<vmem>>, vector<18x1x16xf32>,
      %c0_47 = arith.constant 0 : index
      %c24 = arith.constant 24 : index
      %c0_48 = arith.constant 0 : index
      %127 = vector.load %arg13[%c0_47, %c24, %c0_48] : memref<18x25x16xf32, #tpu.memory_space<vmem>>, vector<18x1x16xf32>
      tpu.vector_store %arg13[%c0_47, %c24, %c0_48], %125 {strides = array<i32>} : memref<18x25x16xf32, #tpu.memory_space<vmem>>, vector<18x1x16xf32>,
    } else {
    }
    %c4_i32 = arith.constant 4 : i32
    %3 = arith.muli %arg1, %c4_i32 : i32
    %c11_i32 = arith.constant 11 : i32
    %4 = arith.minsi %3, %c11_i32 : i32
    %c0 = arith.constant 0 : index
    %5 = arith.index_cast %4 : i32 to index
    %c0_1 = arith.constant 0 : index
    %c0_2 = arith.constant 0 : index
    %6 = vector.load %arg2[%c0, %5, %c0_1, %c0_2] : memref<1x16x16x4xf32, #tpu.memory_space<vmem>>, vector<1x5x16x4xf32>
    %7 = vector.shape_cast %6 : vector<1x5x16x4xf32> to vector<5x16x4xf32>
    %8 = vector.shape_cast %7 : vector<5x16x4xf32> to vector<80x4xf32>
    %c0_3 = arith.constant 0 : index
    %c0_4 = arith.constant 0 : index
    %9 = vector.load %arg3[%c0_3, %c0_4] : memref<4x16xf32, #tpu.memory_space<vmem>>, vector<4x16xf32>
    %cst = arith.constant dense<0.000000e+00> : vector<80x16xf32>
    %10 = tpu.matmul %8, %9, %cst {dimension_numbers = #tpu.dot_dimension_numbers<[1], [0], [0], [1], [0, 0, 1, 1], [], []>} : vector<80x4xf32>, vector<4x16xf32>, vector<80x16xf32> -> vector<80x16xf32>
    %c0_5 = arith.constant 0 : index
    %c0_6 = arith.constant 0 : index
    %11 = vector.load %arg4[%c0_5, %c0_6] : memref<1x16xf32, #tpu.memory_space<vmem>>, vector<1x16xf32>
    %12 = vector.broadcast %11 : vector<1x16xf32> to vector<80x16xf32>
    %13 = arith.mulf %10, %12 : vector<80x16xf32>
    %c0_7 = arith.constant 0 : index
    %c0_8 = arith.constant 0 : index
    %14 = vector.load %arg5[%c0_7, %c0_8] : memref<1x16xf32, #tpu.memory_space<vmem>>, vector<1x16xf32>
    %15 = vector.broadcast %14 : vector<1x16xf32> to vector<80x16xf32>
    %16 = arith.addf %13, %15 : vector<80x16xf32>
    %cst_9 = arith.constant 0.000000e+00 : f32
    %cst_10 = arith.constant 6.000000e+00 : f32
    %17 = vector.broadcast %cst_9 : f32 to vector<80x16xf32>
    %18 = arith.maximumf %17, %16 : vector<80x16xf32>
    %19 = vector.broadcast %cst_10 : f32 to vector<80x16xf32>
    %20 = arith.minimumf %19, %18 : vector<80x16xf32>
    %21 = vector.shape_cast %20 : vector<80x16xf32> to vector<5x16x16xf32>
    %c1_i32 = arith.constant 1 : i32
    %22 = arith.addi %4, %c1_i32 : i32
    %23 = arith.index_cast %22 : i32 to index
    %c8 = arith.constant 8 : index
    %c0_11 = arith.constant 0 : index
    %24 = vector.load %arg13[%23, %c8, %c0_11] : memref<18x25x16xf32, #tpu.memory_space<vmem>>, vector<5x16x16xf32>
    tpu.vector_store %arg13[%23, %c8, %c0_11], %21 {strides = array<i32>} : memref<18x25x16xf32, #tpu.memory_space<vmem>>, vector<5x16x16xf32>,
    %c0_12 = arith.constant 0 : index
    %c0_13 = arith.constant 0 : index
    %25 = vector.load %arg6[%c0_12, %c0_13] : memref<9x16xf32, #tpu.memory_space<vmem>>, vector<9x16xf32>
    %c0_14 = arith.constant 0 : index
    %c0_15 = arith.constant 0 : index
    %26 = vector.load %arg7[%c0_14, %c0_15] : memref<1x16xf32, #tpu.memory_space<vmem>>, vector<1x16xf32>
    %27 = vector.shape_cast %26 : vector<1x16xf32> to vector<16xf32>
    %c0_16 = arith.constant 0 : index
    %c0_17 = arith.constant 0 : index
    %28 = vector.load %arg8[%c0_16, %c0_17] : memref<1x16xf32, #tpu.memory_space<vmem>>, vector<1x16xf32>
    %29 = vector.shape_cast %28 : vector<1x16xf32> to vector<16xf32>
    %c4_i32_18 = arith.constant 4 : i32
    %30 = arith.muli %arg1, %c4_i32_18 : i32
    %31 = arith.index_cast %30 : i32 to index
    %c7 = arith.constant 7 : index
    %c0_19 = arith.constant 0 : index
    %32 = vector.load %arg13[%31, %c7, %c0_19] : memref<18x25x16xf32, #tpu.memory_space<vmem>>, vector<6x18x16xf32>
    %33 = vector.extract_strided_slice %32 {offsets = [0, 0, 0], sizes = [4, 16, 16], strides = [1, 1, 1]} : vector<6x18x16xf32> to vector<4x16x16xf32>
    %34 = vector.extract_strided_slice %25 {offsets = [0, 0], sizes = [1, 16], strides = [1, 1]} : vector<9x16xf32> to vector<1x16xf32>
    %35 = vector.shape_cast %34 : vector<1x16xf32> to vector<16xf32>
    %36 = vector.shape_cast %35 : vector<16xf32> to vector<1x1x16xf32>
    %37 = vector.broadcast %36 : vector<1x1x16xf32> to vector<4x16x16xf32>
    %38 = arith.mulf %33, %37 : vector<4x16x16xf32>
    %39 = vector.extract_strided_slice %32 {offsets = [0, 1, 0], sizes = [4, 16, 16], strides = [1, 1, 1]} : vector<6x18x16xf32> to vector<4x16x16xf32>
    %40 = vector.extract_strided_slice %25 {offsets = [1, 0], sizes = [1, 16], strides = [1, 1]} : vector<9x16xf32> to vector<1x16xf32>
    %41 = vector.shape_cast %40 : vector<1x16xf32> to vector<16xf32>
    %42 = vector.shape_cast %41 : vector<16xf32> to vector<1x1x16xf32>
    %43 = vector.broadcast %42 : vector<1x1x16xf32> to vector<4x16x16xf32>
    %44 = arith.mulf %39, %43 : vector<4x16x16xf32>
    %45 = arith.addf %38, %44 : vector<4x16x16xf32>
    %46 = vector.extract_strided_slice %32 {offsets = [0, 2, 0], sizes = [4, 16, 16], strides = [1, 1, 1]} : vector<6x18x16xf32> to vector<4x16x16xf32>
    %47 = vector.extract_strided_slice %25 {offsets = [2, 0], sizes = [1, 16], strides = [1, 1]} : vector<9x16xf32> to vector<1x16xf32>
    %48 = vector.shape_cast %47 : vector<1x16xf32> to vector<16xf32>
    %49 = vector.shape_cast %48 : vector<16xf32> to vector<1x1x16xf32>
    %50 = vector.broadcast %49 : vector<1x1x16xf32> to vector<4x16x16xf32>
    %51 = arith.mulf %46, %50 : vector<4x16x16xf32>
    %52 = arith.addf %45, %51 : vector<4x16x16xf32>
    %53 = vector.extract_strided_slice %32 {offsets = [1, 0, 0], sizes = [4, 16, 16], strides = [1, 1, 1]} : vector<6x18x16xf32> to vector<4x16x16xf32>
    %54 = vector.extract_strided_slice %25 {offsets = [3, 0], sizes = [1, 16], strides = [1, 1]} : vector<9x16xf32> to vector<1x16xf32>
    %55 = vector.shape_cast %54 : vector<1x16xf32> to vector<16xf32>
    %56 = vector.shape_cast %55 : vector<16xf32> to vector<1x1x16xf32>
    %57 = vector.broadcast %56 : vector<1x1x16xf32> to vector<4x16x16xf32>
    %58 = arith.mulf %53, %57 : vector<4x16x16xf32>
    %59 = arith.addf %52, %58 : vector<4x16x16xf32>
    %60 = vector.extract_strided_slice %32 {offsets = [1, 1, 0], sizes = [4, 16, 16], strides = [1, 1, 1]} : vector<6x18x16xf32> to vector<4x16x16xf32>
    %61 = vector.extract_strided_slice %25 {offsets = [4, 0], sizes = [1, 16], strides = [1, 1]} : vector<9x16xf32> to vector<1x16xf32>
    %62 = vector.shape_cast %61 : vector<1x16xf32> to vector<16xf32>
    %63 = vector.shape_cast %62 : vector<16xf32> to vector<1x1x16xf32>
    %64 = vector.broadcast %63 : vector<1x1x16xf32> to vector<4x16x16xf32>
    %65 = arith.mulf %60, %64 : vector<4x16x16xf32>
    %66 = arith.addf %59, %65 : vector<4x16x16xf32>
    %67 = vector.extract_strided_slice %32 {offsets = [1, 2, 0], sizes = [4, 16, 16], strides = [1, 1, 1]} : vector<6x18x16xf32> to vector<4x16x16xf32>
    %68 = vector.extract_strided_slice %25 {offsets = [5, 0], sizes = [1, 16], strides = [1, 1]} : vector<9x16xf32> to vector<1x16xf32>
    %69 = vector.shape_cast %68 : vector<1x16xf32> to vector<16xf32>
    %70 = vector.shape_cast %69 : vector<16xf32> to vector<1x1x16xf32>
    %71 = vector.broadcast %70 : vector<1x1x16xf32> to vector<4x16x16xf32>
    %72 = arith.mulf %67, %71 : vector<4x16x16xf32>
    %73 = arith.addf %66, %72 : vector<4x16x16xf32>
    %74 = vector.extract_strided_slice %32 {offsets = [2, 0, 0], sizes = [4, 16, 16], strides = [1, 1, 1]} : vector<6x18x16xf32> to vector<4x16x16xf32>
    %75 = vector.extract_strided_slice %25 {offsets = [6, 0], sizes = [1, 16], strides = [1, 1]} : vector<9x16xf32> to vector<1x16xf32>
    %76 = vector.shape_cast %75 : vector<1x16xf32> to vector<16xf32>
    %77 = vector.shape_cast %76 : vector<16xf32> to vector<1x1x16xf32>
    %78 = vector.broadcast %77 : vector<1x1x16xf32> to vector<4x16x16xf32>
    %79 = arith.mulf %74, %78 : vector<4x16x16xf32>
    %80 = arith.addf %73, %79 : vector<4x16x16xf32>
    %81 = vector.extract_strided_slice %32 {offsets = [2, 1, 0], sizes = [4, 16, 16], strides = [1, 1, 1]} : vector<6x18x16xf32> to vector<4x16x16xf32>
    %82 = vector.extract_strided_slice %25 {offsets = [7, 0], sizes = [1, 16], strides = [1, 1]} : vector<9x16xf32> to vector<1x16xf32>
    %83 = vector.shape_cast %82 : vector<1x16xf32> to vector<16xf32>
    %84 = vector.shape_cast %83 : vector<16xf32> to vector<1x1x16xf32>
    %85 = vector.broadcast %84 : vector<1x1x16xf32> to vector<4x16x16xf32>
    %86 = arith.mulf %81, %85 : vector<4x16x16xf32>
    %87 = arith.addf %80, %86 : vector<4x16x16xf32>
    %88 = vector.extract_strided_slice %32 {offsets = [2, 2, 0], sizes = [4, 16, 16], strides = [1, 1, 1]} : vector<6x18x16xf32> to vector<4x16x16xf32>
    %89 = vector.extract_strided_slice %25 {offsets = [8, 0], sizes = [1, 16], strides = [1, 1]} : vector<9x16xf32> to vector<1x16xf32>
    %90 = vector.shape_cast %89 : vector<1x16xf32> to vector<16xf32>
    %91 = vector.shape_cast %90 : vector<16xf32> to vector<1x1x16xf32>
    %92 = vector.broadcast %91 : vector<1x1x16xf32> to vector<4x16x16xf32>
    %93 = arith.mulf %88, %92 : vector<4x16x16xf32>
    %94 = arith.addf %87, %93 : vector<4x16x16xf32>
    %95 = vector.shape_cast %27 : vector<16xf32> to vector<1x1x16xf32>
    %96 = vector.broadcast %95 : vector<1x1x16xf32> to vector<4x16x16xf32>
    %97 = arith.mulf %94, %96 : vector<4x16x16xf32>
    %98 = vector.shape_cast %29 : vector<16xf32> to vector<1x1x16xf32>
    %99 = vector.broadcast %98 : vector<1x1x16xf32> to vector<4x16x16xf32>
    %100 = arith.addf %97, %99 : vector<4x16x16xf32>
    %cst_20 = arith.constant 0.000000e+00 : f32
    %cst_21 = arith.constant 6.000000e+00 : f32
    %101 = vector.broadcast %cst_20 : f32 to vector<4x16x16xf32>
    %102 = arith.maximumf %101, %100 : vector<4x16x16xf32>
    %103 = vector.broadcast %cst_21 : f32 to vector<4x16x16xf32>
    %104 = arith.minimumf %103, %102 : vector<4x16x16xf32>
    %105 = vector.shape_cast %104 : vector<4x16x16xf32> to vector<64x16xf32>
    %c0_22 = arith.constant 0 : index
    %c0_23 = arith.constant 0 : index
    %106 = vector.load %arg9[%c0_22, %c0_23] : memref<16x4xf32, #tpu.memory_space<vmem>>, vector<16x4xf32>
    %cst_24 = arith.constant dense<0.000000e+00> : vector<64x4xf32>
    %107 = tpu.matmul %105, %106, %cst_24 {dimension_numbers = #tpu.dot_dimension_numbers<[1], [0], [0], [1], [0, 0, 1, 1], [], []>} : vector<64x16xf32>, vector<16x4xf32>, vector<64x4xf32> -> vector<64x4xf32>
    %c0_25 = arith.constant 0 : index
    %c0_26 = arith.constant 0 : index
    %108 = vector.load %arg10[%c0_25, %c0_26] : memref<1x4xf32, #tpu.memory_space<vmem>>, vector<1x4xf32>
    %109 = vector.broadcast %108 : vector<1x4xf32> to vector<64x4xf32>
    %110 = arith.mulf %107, %109 : vector<64x4xf32>
    %c0_27 = arith.constant 0 : index
    %c0_28 = arith.constant 0 : index
    %111 = vector.load %arg11[%c0_27, %c0_28] : memref<1x4xf32, #tpu.memory_space<vmem>>, vector<1x4xf32>
    %112 = vector.broadcast %111 : vector<1x4xf32> to vector<64x4xf32>
    %113 = arith.addf %110, %112 : vector<64x4xf32>
    %c4_i32_29 = arith.constant 4 : i32
    %114 = arith.muli %arg1, %c4_i32_29 : i32
    %c0_30 = arith.constant 0 : index
    %115 = arith.index_cast %114 : i32 to index
    %c0_31 = arith.constant 0 : index
    %c0_32 = arith.constant 0 : index
    %116 = vector.load %arg2[%c0_30, %115, %c0_31, %c0_32] : memref<1x16x16x4xf32, #tpu.memory_space<vmem>>, vector<1x4x16x4xf32>
    %117 = vector.shape_cast %116 : vector<1x4x16x4xf32> to vector<4x16x4xf32>
    %118 = vector.shape_cast %117 : vector<4x16x4xf32> to vector<64x4xf32>
    %119 = arith.addf %113, %118 : vector<64x4xf32>
    %120 = vector.shape_cast %119 : vector<64x4xf32> to vector<1x4x16x4xf32>
    %c0_33 = arith.constant 0 : index
    %c0_34 = arith.constant 0 : index
    %c0_35 = arith.constant 0 : index
    %c0_36 = arith.constant 0 : index
    %121 = vector.load %arg12[%c0_33, %c0_34, %c0_35, %c0_36] : memref<1x4x16x4xf32, #tpu.memory_space<vmem>>, vector<1x4x16x4xf32>
    tpu.vector_store %arg12[%c0_33, %c0_34, %c0_35, %c0_36], %120 {strides = array<i32>} : memref<1x4x16x4xf32, #tpu.memory_space<vmem>>, vector<1x4x16x4xf32>,
    return
  }
  func.func @transform_0(%arg0: i32, %arg1: i32) -> (i32, i32, i32, i32) {
    %c0_i32 = arith.constant 0 : i32
    %c0_i32_0 = arith.constant 0 : i32
    %c0_i32_1 = arith.constant 0 : i32
    %c0_i32_2 = arith.constant 0 : i32
    return %arg0, %c0_i32, %c0_i32_0, %c0_i32_1 : i32, i32, i32, i32
  }
  func.func @transform_1(%arg0: i32, %arg1: i32) -> (i32, i32) {
    %c0_i32 = arith.constant 0 : i32
    %c0_i32_0 = arith.constant 0 : i32
    %c0_i32_1 = arith.constant 0 : i32
    return %c0_i32, %c0_i32_0 : i32, i32
  }
  func.func @transform_2(%arg0: i32, %arg1: i32) -> (i32, i32) {
    %c0_i32 = arith.constant 0 : i32
    %c0_i32_0 = arith.constant 0 : i32
    %c0_i32_1 = arith.constant 0 : i32
    return %c0_i32, %c0_i32_0 : i32, i32
  }
  func.func @transform_3(%arg0: i32, %arg1: i32) -> (i32, i32) {
    %c0_i32 = arith.constant 0 : i32
    %c0_i32_0 = arith.constant 0 : i32
    %c0_i32_1 = arith.constant 0 : i32
    return %c0_i32, %c0_i32_0 : i32, i32
  }
  func.func @transform_4(%arg0: i32, %arg1: i32) -> (i32, i32) {
    %c0_i32 = arith.constant 0 : i32
    %c0_i32_0 = arith.constant 0 : i32
    %c0_i32_1 = arith.constant 0 : i32
    return %c0_i32, %c0_i32_0 : i32, i32
  }
  func.func @transform_5(%arg0: i32, %arg1: i32) -> (i32, i32) {
    %c0_i32 = arith.constant 0 : i32
    %c0_i32_0 = arith.constant 0 : i32
    %c0_i32_1 = arith.constant 0 : i32
    return %c0_i32, %c0_i32_0 : i32, i32
  }
  func.func @transform_6(%arg0: i32, %arg1: i32) -> (i32, i32) {
    %c0_i32 = arith.constant 0 : i32
    %c0_i32_0 = arith.constant 0 : i32
    %c0_i32_1 = arith.constant 0 : i32
    return %c0_i32, %c0_i32_0 : i32, i32
  }
  func.func @transform_7(%arg0: i32, %arg1: i32) -> (i32, i32) {
    %c0_i32 = arith.constant 0 : i32
    %c0_i32_0 = arith.constant 0 : i32
    %c0_i32_1 = arith.constant 0 : i32
    return %c0_i32, %c0_i32_0 : i32, i32
  }
  func.func @transform_8(%arg0: i32, %arg1: i32) -> (i32, i32) {
    %c0_i32 = arith.constant 0 : i32
    %c0_i32_0 = arith.constant 0 : i32
    %c0_i32_1 = arith.constant 0 : i32
    return %c0_i32, %c0_i32_0 : i32, i32
  }
  func.func @transform_9(%arg0: i32, %arg1: i32) -> (i32, i32) {
    %c0_i32 = arith.constant 0 : i32
    %c0_i32_0 = arith.constant 0 : i32
    %c0_i32_1 = arith.constant 0 : i32
    return %c0_i32, %c0_i32_0 : i32, i32
  }
  func.func @transform_10(%arg0: i32, %arg1: i32) -> (i32, i32, i32, i32) {
    %c0_i32 = arith.constant 0 : i32
    %c0_i32_0 = arith.constant 0 : i32
    %c0_i32_1 = arith.constant 0 : i32
    return %arg0, %arg1, %c0_i32, %c0_i32_0 : i32, i32, i32, i32
  }
}

</mosaic_0001>

<llo_original>
// kernel: tpu_custom_call.1
$region0: #{tpu_custom_call.1}
  #allocation0 [shape = 'u32[]', space=smem, size = 0x4, offset = 0x4, fixed_abs, tag = 'smem constant byte address 0x4 - core index']
  #allocation1 [shape = 'u32[144,128]{1,0:T(1,128)}', space=vmem, size = 0x12000, scoped, tag = 'internal scratch']
  #allocation2 [shape = 'f32[18,25,16]{2,1,0:T(8,128)}', space=vmem, size = 0x48000, scoped, tag = 'scratch operand']
  %s0 = inlined_call_operand.vmem [shape: f32[2,16,16,4], index: 0, kind: input, shape index: {}]
  %s1 = inlined_call_operand.vmem [shape: f32[4,16], index: 1, kind: input, shape index: {}]
  %s2 = inlined_call_operand.vmem [shape: f32[1,16], index: 2, kind: input, shape index: {}]
  %s3 = inlined_call_operand.vmem [shape: f32[1,16], index: 3, kind: input, shape index: {}]
  %s4 = inlined_call_operand.vmem [shape: f32[9,16], index: 4, kind: input, shape index: {}]
  %s5 = inlined_call_operand.vmem [shape: f32[1,16], index: 5, kind: input, shape index: {}]
  %s6 = inlined_call_operand.vmem [shape: f32[1,16], index: 6, kind: input, shape index: {}]
  %s7 = inlined_call_operand.vmem [shape: f32[16,4], index: 7, kind: input, shape index: {}]
  %s8 = inlined_call_operand.vmem [shape: f32[1,4], index: 8, kind: input, shape index: {}]
  %s9 = inlined_call_operand.vmem [shape: f32[1,4], index: 9, kind: input, shape index: {}]
  %s10 = inlined_call_operand.vmem [shape: f32[2,16,16,4], index: 10, kind: output, shape index: {}]
  %s11 = sld [smem:[#allocation0]]
  $region77: #{tpu_custom_call.1} parent=0
    _
  %s13 = ssub.s32 1, %s11
  %s14 = scalar_select 0, %s13, %s11
  loop: start=0, step=1, limit=10
  $region2: #{tpu_custom_call.1} parent=0 // loop_pre_header
    _
  $region3: #{tpu_custom_call.1} parent=0 // loop_header
    %s16 = sphi 0, %s20
    %p17 = scmp.ge.s32.totalorder %s16, 10
    %s23 = sphi 0, %s35
    %s24 = sphi 0, %s31
    %s25 = sphi 0, %s23
    %s26 = sphi 0, %s24
    %s27 = sphi 0, %s25
    %s28 = sphi 0, %s26
    %s38 = sphi 0, %s40
    %s41 = sphi 0, %s38
    %s42 = sphi 0, %s41
    %s58 = sphi 0, %s42
    %s62 = sphi 0, %s62
    %s64 = sphi 0, %s62
    %s65 = sphi 0, %s64
    %s79 = sphi 0, %s65
    %s83 = sphi 0, %s83
    %s85 = sphi 0, %s83
    %s86 = sphi 0, %s85
    %s100 = sphi 0, %s86
    %s104 = sphi 0, %s104
    %s106 = sphi 0, %s104
    %s107 = sphi 0, %s106
    %s121 = sphi 0, %s107
    %s125 = sphi 0, %s125
    %s127 = sphi 0, %s125
    %s128 = sphi 0, %s127
    %s142 = sphi 0, %s128
    %s146 = sphi 0, %s146
    %s148 = sphi 0, %s146
    %s149 = sphi 0, %s148
    %s163 = sphi 0, %s149
    %s167 = sphi 0, %s167
    %s169 = sphi 0, %s167
    %s170 = sphi 0, %s169
    %s184 = sphi 0, %s170
    %s188 = sphi 0, %s188
    %s190 = sphi 0, %s188
    %s191 = sphi 0, %s190
    %s205 = sphi 0, %s191
    %s209 = sphi 0, %s209
    %s211 = sphi 0, %s209
    %s212 = sphi 0, %s211
    %s226 = sphi 0, %s212
    %s230 = sphi 0, %s230
    %s232 = sphi 0, %s230
    %s233 = sphi 0, %s232
    %s247 = sphi 0, %s233
    %s255 = sphi 0, %s257
    %s258 = sphi 0, %s255
    %s259 = sphi 0, %s258
    %s275 = sphi 0, %s259
  $region4: #{tpu_custom_call.1} parent=0 // loop_header_branch
    %19 = sbr.rel (%p17) target = $region8
  $region5: #{tpu_custom_call.1} parent=0 // loop_body
    %s21 = ssub.s32 %s16, 1
    %s22 = ssub.s32 %s16, 2
    %s29 = sadd.s32 1, %s24
    %p30 = scmp.ge.s32.totalorder %s29, 4
    %s31 = scalar_select %p30, 0, %s29
    %s32 = sadd.s32 1, %s23
    %s33 = scalar_select %p30, %s32, %s23
    %p34 = scmp.ge.s32.totalorder %s33, 2
    %s35 = scalar_select %p34, 0, %s33
    %s36 = ssub.s32 %s23, %s35
    %p37 = scmp.eq.s32.totalorder %s36, 0
    %s39 = sadd.s32 %s38, 1
    %s40 = scalar_select %p37, %s38, %s39
    %p43 = pneg %p37
    %p44 = scmp.eq.s32.totalorder %s16, 7
    %p45 = por %p43, %p44
    %p46 = scmp.ne.s32.totalorder %s38, %s41
    %p47 = scmp.eq.s32.totalorder %s16, 0
    %p48 = por %p46, %p47
    %p49 = scmp.ne.s32.totalorder %s38, %s41
    %p50 = scmp.eq.s32.totalorder %s21, 7
    %p51 = por %p49, %p50
    %p52 = scmp.ne.s32.totalorder %s41, %s42
    %p53 = scmp.eq.s32.totalorder %s21, 0
    %p54 = por %p52, %p53
    %p55 = scmp.ne.s32.totalorder %s41, %s42
    %p56 = scmp.eq.s32.totalorder %s22, 7
    %p57 = por %p55, %p56
    %p59 = scmp.ne.s32.totalorder %s42, %s58
    %p60 = scmp.eq.s32.totalorder %s22, 0
    %p61 = por %p59, %p60
    %s63 = sadd.s32 %s62, 1
    %p66 = scmp.eq.s32.totalorder %s16, 7
    %p67 = scmp.ne.s32.totalorder %s62, %s64
    %p68 = scmp.eq.s32.totalorder %s16, 0
    %p69 = por %p67, %p68
    %p70 = scmp.ne.s32.totalorder %s62, %s64
    %p71 = scmp.eq.s32.totalorder %s21, 7
    %p72 = por %p70, %p71
    %p73 = scmp.ne.s32.totalorder %s64, %s65
    %p74 = scmp.eq.s32.totalorder %s21, 0
    %p75 = por %p73, %p74
    %p76 = scmp.ne.s32.totalorder %s64, %s65
    %p77 = scmp.eq.s32.totalorder %s22, 7
    %p78 = por %p76, %p77
    %p80 = scmp.ne.s32.totalorder %s65, %s79
    %p81 = scmp.eq.s32.totalorder %s22, 0
    %p82 = por %p80, %p81
    %s84 = sadd.s32 %s83, 1
    %p87 = scmp.eq.s32.totalorder %s16, 7
    %p88 = scmp.ne.s32.totalorder %s83, %s85
    %p89 = scmp.eq.s32.totalorder %s16, 0
    %p90 = por %p88, %p89
    %p91 = scmp.ne.s32.totalorder %s83, %s85
    %p92 = scmp.eq.s32.totalorder %s21, 7
    %p93 = por %p91, %p92
    %p94 = scmp.ne.s32.totalorder %s85, %s86
    %p95 = scmp.eq.s32.totalorder %s21, 0
    %p96 = por %p94, %p95
    %p97 = scmp.ne.s32.totalorder %s85, %s86
    %p98 = scmp.eq.s32.totalorder %s22, 7
    %p99 = por %p97, %p98
    %p101 = scmp.ne.s32.totalorder %s86, %s100
    %p102 = scmp.eq.s32.totalorder %s22, 0
    %p103 = por %p101, %p102
    %s105 = sadd.s32 %s104, 1
    %p108 = scmp.eq.s32.totalorder %s16, 7
    %p109 = scmp.ne.s32.totalorder %s104, %s106
    %p110 = scmp.eq.s32.totalorder %s16, 0
    %p111 = por %p109, %p110
    %p112 = scmp.ne.s32.totalorder %s104, %s106
    %p113 = scmp.eq.s32.totalorder %s21, 7
    %p114 = por %p112, %p113
    %p115 = scmp.ne.s32.totalorder %s106, %s107
    %p116 = scmp.eq.s32.totalorder %s21, 0
    %p117 = por %p115, %p116
    %p118 = scmp.ne.s32.totalorder %s106, %s107
    %p119 = scmp.eq.s32.totalorder %s22, 7
    %p120 = por %p118, %p119
    %p122 = scmp.ne.s32.totalorder %s107, %s121
    %p123 = scmp.eq.s32.totalorder %s22, 0
    %p124 = por %p122, %p123
    %s126 = sadd.s32 %s125, 1
    %p129 = scmp.eq.s32.totalorder %s16, 7
    %p130 = scmp.ne.s32.totalorder %s125, %s127
    %p131 = scmp.eq.s32.totalorder %s16, 0
    %p132 = por %p130, %p131
    %p133 = scmp.ne.s32.totalorder %s125, %s127
    %p134 = scmp.eq.s32.totalorder %s21, 7
    %p135 = por %p133, %p134
    %p136 = scmp.ne.s32.totalorder %s127, %s128
    %p137 = scmp.eq.s32.totalorder %s21, 0
    %p138 = por %p136, %p137
    %p139 = scmp.ne.s32.totalorder %s127, %s128
    %p140 = scmp.eq.s32.totalorder %s22, 7
    %p141 = por %p139, %p140
    %p143 = scmp.ne.s32.totalorder %s128, %s142
    %p144 = scmp.eq.s32.totalorder %s22, 0
    %p145 = por %p143, %p144
    %s147 = sadd.s32 %s146, 1
    %p150 = scmp.eq.s32.totalorder %s16, 7
    %p151 = scmp.ne.s32.totalorder %s146, %s148
    %p152 = scmp.eq.s32.totalorder %s16, 0
    %p153 = por %p151, %p152
    %p154 = scmp.ne.s32.totalorder %s146, %s148
    %p155 = scmp.eq.s32.totalorder %s21, 7
    %p156 = por %p154, %p155
    %p157 = scmp.ne.s32.totalorder %s148, %s149
    %p158 = scmp.eq.s32.totalorder %s21, 0
    %p159 = por %p157, %p158
    %p160 = scmp.ne.s32.totalorder %s148, %s149
    %p161 = scmp.eq.s32.totalorder %s22, 7
    %p162 = por %p160, %p161
    %p164 = scmp.ne.s32.totalorder %s149, %s163
    %p165 = scmp.eq.s32.totalorder %s22, 0
    %p166 = por %p164, %p165
    %s168 = sadd.s32 %s167, 1
    %p171 = scmp.eq.s32.totalorder %s16, 7
    %p172 = scmp.ne.s32.totalorder %s167, %s169
    %p173 = scmp.eq.s32.totalorder %s16, 0
    %p174 = por %p172, %p173
    %p175 = scmp.ne.s32.totalorder %s167, %s169
    %p176 = scmp.eq.s32.totalorder %s21, 7
    %p177 = por %p175, %p176
    %p178 = scmp.ne.s32.totalorder %s169, %s170
    %p179 = scmp.eq.s32.totalorder %s21, 0
    %p180 = por %p178, %p179
    %p181 = scmp.ne.s32.totalorder %s169, %s170
    %p182 = scmp.eq.s32.totalorder %s22, 7
    %p183 = por %p181, %p182
    %p185 = scmp.ne.s32.totalorder %s170, %s184
    %p186 = scmp.eq.s32.totalorder %s22, 0
    %p187 = por %p185, %p186
    %s189 = sadd.s32 %s188, 1
    %p192 = scmp.eq.s32.totalorder %s16, 7
    %p193 = scmp.ne.s32.totalorder %s188, %s190
    %p194 = scmp.eq.s32.totalorder %s16, 0
    %p195 = por %p193, %p194
    %p196 = scmp.ne.s32.totalorder %s188, %s190
    %p197 = scmp.eq.s32.totalorder %s21, 7
    %p198 = por %p196, %p197
    %p199 = scmp.ne.s32.totalorder %s190, %s191
    %p200 = scmp.eq.s32.totalorder %s21, 0
    %p201 = por %p199, %p200
    %p202 = scmp.ne.s32.totalorder %s190, %s191
    %p203 = scmp.eq.s32.totalorder %s22, 7
    %p204 = por %p202, %p203
    %p206 = scmp.ne.s32.totalorder %s191, %s205
    %p207 = scmp.eq.s32.totalorder %s22, 0
    %p208 = por %p206, %p207
    %s210 = sadd.s32 %s209, 1
    %p213 = scmp.eq.s32.totalorder %s16, 7
    %p214 = scmp.ne.s32.totalorder %s209, %s211
    %p215 = scmp.eq.s32.totalorder %s16, 0
    %p216 = por %p214, %p215
    %p217 = scmp.ne.s32.totalorder %s209, %s211
    %p218 = scmp.eq.s32.totalorder %s21, 7
    %p219 = por %p217, %p218
    %p220 = scmp.ne.s32.totalorder %s211, %s212
    %p221 = scmp.eq.s32.totalorder %s21, 0
    %p222 = por %p220, %p221
    %p223 = scmp.ne.s32.totalorder %s211, %s212
    %p224 = scmp.eq.s32.totalorder %s22, 7
    %p225 = por %p223, %p224
    %p227 = scmp.ne.s32.totalorder %s212, %s226
    %p228 = scmp.eq.s32.totalorder %s22, 0
    %p229 = por %p227, %p228
    %s231 = sadd.s32 %s230, 1
    %p234 = scmp.eq.s32.totalorder %s16, 7
    %p235 = scmp.ne.s32.totalorder %s230, %s232
    %p236 = scmp.eq.s32.totalorder %s16, 0
    %p237 = por %p235, %p236
    %p238 = scmp.ne.s32.totalorder %s230, %s232
    %p239 = scmp.eq.s32.totalorder %s21, 7
    %p240 = por %p238, %p239
    %p241 = scmp.ne.s32.totalorder %s232, %s233
    %p242 = scmp.eq.s32.totalorder %s21, 0
    %p243 = por %p241, %p242
    %p244 = scmp.ne.s32.totalorder %s232, %s233
    %p245 = scmp.eq.s32.totalorder %s22, 7
    %p246 = por %p244, %p245
    %p248 = scmp.ne.s32.totalorder %s233, %s247
    %p249 = scmp.eq.s32.totalorder %s22, 0
    %p250 = por %p248, %p249
    %s251 = ssub.s32 %s23, %s35
    %s252 = ssub.s32 %s24, %s31
    %s253 = sor.u32 %s251, %s252
    %p254 = scmp.eq.s32.totalorder %s253, 0
    %s256 = sadd.s32 %s255, 1
    %s257 = scalar_select %p254, %s255, %s256
    %p260 = pneg %p254
    %p261 = scmp.eq.s32.totalorder %s16, 7
    %p262 = por %p260, %p261
    %p263 = scmp.ne.s32.totalorder %s255, %s258
    %p264 = scmp.eq.s32.totalorder %s16, 0
    %p265 = por %p263, %p264
    %p266 = scmp.ne.s32.totalorder %s255, %s258
    %p267 = scmp.eq.s32.totalorder %s21, 7
    %p268 = por %p266, %p267
    %p269 = scmp.ne.s32.totalorder %s258, %s259
    %p270 = scmp.eq.s32.totalorder %s21, 0
    %p271 = por %p269, %p270
    %p272 = scmp.ne.s32.totalorder %s258, %s259
    %p273 = scmp.eq.s32.totalorder %s22, 7
    %p274 = por %p272, %p273
    %p276 = scmp.ne.s32.totalorder %s259, %s275
    %p277 = scmp.eq.s32.totalorder %s22, 0
    %p278 = por %p276, %p277
    %p279 = scmp.le.s32.totalorder 1, %s16
    %p280 = scmp.lt.s32.totalorder %s16, 9
    %p281 = pnand %p279, %p280
    %p282 = pneg %p281
    // Predicated region
    $region9: #{tpu_custom_call.1} parent=5 // pred_check
      _
    $region10: #{tpu_custom_call.1} parent=5 // pred_check_branch
      %284 = sbr.rel (%p281) target = $region12
    $region11: #{tpu_custom_call.1} parent=5 // pred_region
      %s285 = ssub.s32 %s16, 1
      // Predicated region
      $region13: #{tpu_custom_call.1} parent=11 // pred_check
        %p286 = pneg %p75
      $region14: #{tpu_custom_call.1} parent=11 // pred_check_branch
        %288 = sbr.rel (%p286) target = $region16
      $region15: #{tpu_custom_call.1} parent=11 // pred_region
        _
      $region16: #{tpu_custom_call.1} parent=11 // pred_fallthru
        _
      // Predicated region
      $region17: #{tpu_custom_call.1} parent=11 // pred_check
        %p289 = pneg %p96
      $region18: #{tpu_custom_call.1} parent=11 // pred_check_branch
        %291 = sbr.rel (%p289) target = $region20
      $region19: #{tpu_custom_call.1} parent=11 // pred_region
        _
      $region20: #{tpu_custom_call.1} parent=11 // pred_fallthru
        _
      // Predicated region
      $region21: #{tpu_custom_call.1} parent=11 // pred_check
        %p292 = pneg %p117
      $region22: #{tpu_custom_call.1} parent=11 // pred_check_branch
        %294 = sbr.rel (%p292) target = $region24
      $region23: #{tpu_custom_call.1} parent=11 // pred_region
        _
      $region24: #{tpu_custom_call.1} parent=11 // pred_fallthru
        _
      // Predicated region
      $region25: #{tpu_custom_call.1} parent=11 // pred_check
        %p295 = pneg %p138
      $region26: #{tpu_custom_call.1} parent=11 // pred_check_branch
        %297 = sbr.rel (%p295) target = $region28
      $region27: #{tpu_custom_call.1} parent=11 // pred_region
        _
      $region28: #{tpu_custom_call.1} parent=11 // pred_fallthru
        _
      // Predicated region
      $region29: #{tpu_custom_call.1} parent=11 // pred_check
        %p298 = pneg %p159
      $region30: #{tpu_custom_call.1} parent=11 // pred_check_branch
        %300 = sbr.rel (%p298) target = $region32
      $region31: #{tpu_custom_call.1} parent=11 // pred_region
        _
      $region32: #{tpu_custom_call.1} parent=11 // pred_fallthru
        _
      // Predicated region
      $region33: #{tpu_custom_call.1} parent=11 // pred_check
        %p301 = pneg %p180
      $region34: #{tpu_custom_call.1} parent=11 // pred_check_branch
        %303 = sbr.rel (%p301) target = $region36
      $region35: #{tpu_custom_call.1} parent=11 // pred_region
        _
      $region36: #{tpu_custom_call.1} parent=11 // pred_fallthru
        _
      // Predicated region
      $region37: #{tpu_custom_call.1} parent=11 // pred_check
        %p304 = pneg %p201
      $region38: #{tpu_custom_call.1} parent=11 // pred_check_branch
        %306 = sbr.rel (%p304) target = $region40
      $region39: #{tpu_custom_call.1} parent=11 // pred_region
        _
      $region40: #{tpu_custom_call.1} parent=11 // pred_fallthru
        _
      // Predicated region
      $region41: #{tpu_custom_call.1} parent=11 // pred_check
        %p307 = pneg %p222
      $region42: #{tpu_custom_call.1} parent=11 // pred_check_branch
        %309 = sbr.rel (%p307) target = $region44
      $region43: #{tpu_custom_call.1} parent=11 // pred_region
        _
      $region44: #{tpu_custom_call.1} parent=11 // pred_fallthru
        _
      // Predicated region
      $region45: #{tpu_custom_call.1} parent=11 // pred_check
        %p310 = pneg %p243
      $region46: #{tpu_custom_call.1} parent=11 // pred_check_branch
        %312 = sbr.rel (%p310) target = $region48
      $region47: #{tpu_custom_call.1} parent=11 // pred_region
        _
      $region48: #{tpu_custom_call.1} parent=11 // pred_fallthru
        _
    $region12: #{tpu_custom_call.1} parent=5 // pred_fallthru
      _
    %p313 = scmp.lt.s32.totalorder %s16, 8
    // Predicated region
    $region49: #{tpu_custom_call.1} parent=5 // pred_check
      %p314 = pneg %p313
    $region50: #{tpu_custom_call.1} parent=5 // pred_check_branch
      %316 = sbr.rel (%p314) target = $region52
    $region51: #{tpu_custom_call.1} parent=5 // pred_region
      // Predicated region
      $region53: #{tpu_custom_call.1} parent=51 // pred_check
        %p317 = pneg %p48
      $region54: #{tpu_custom_call.1} parent=51 // pred_check_branch
        %319 = sbr.rel (%p317) target = $region56
      $region55: #{tpu_custom_call.1} parent=51 // pred_region
        %p320 = scmp.lt.s32.totalorder %s23, 1
        %s321 = scalar_select %p320, %s23, 1
        %s322 = smul.addr %s321, 32
        %s323 = smul.addr %s322, 8
        %s324 = scalar_lea.vmem %s0, %s323
      $region56: #{tpu_custom_call.1} parent=51 // pred_fallthru
        _
    $region52: #{tpu_custom_call.1} parent=5 // pred_fallthru
      _
    %p325 = scmp.le.s32.totalorder 1, %s16
    %p326 = scmp.lt.s32.totalorder %s16, 9
    %p327 = pnand %p325, %p326
    %p328 = pneg %p327
    // Predicated region
    $region57: #{tpu_custom_call.1} parent=5 // pred_check
      _
    $region58: #{tpu_custom_call.1} parent=5 // pred_check_branch
      %330 = sbr.rel (%p327) target = $region60
    $region59: #{tpu_custom_call.1} parent=5 // pred_region
      %s331 = ssub.s32 %s16, 1
      %p332 = scmp.lt.s32.totalorder %s25, 1
      %s333 = scalar_select %p332, %s25, 1
      %s334 = smul.addr %s333, 32
      %s335 = smul.addr %s334, 8
      %s336 = scalar_lea.vmem %s0, %s335
      %p337 = pneg %p54
      %p338 = pneg %p51
      %p339 = pneg %p75
      %p340 = pneg %p72
      %p341 = pneg %p96
      %p342 = pneg %p93
      %p343 = pneg %p117
      %p344 = pneg %p114
      %p345 = pneg %p138
      %p346 = pneg %p135
      %p347 = pneg %p159
      %p348 = pneg %p156
      %p349 = pneg %p180
      %p350 = pneg %p177
      %p351 = pneg %p201
      %p352 = pneg %p198
      %p353 = pneg %p222
      %p354 = pneg %p219
      %p355 = pneg %p243
      %p356 = pneg %p240
      %p357 = pneg %p271
      %p358 = pneg %p268
      %s359 = smul.u32 4, %s26
      %p360 = scmp.lt.s32.totalorder %s25, 1
      %s361 = scalar_select %p360, %s25, 1
      %p362 = scmp.lt.s32.totalorder %s359, 15
      %s363 = scalar_select %p362, %s359, 15
      %s364 = smul.addr %s363, 2
      %s365 = smul.addr %s361, 32
      %s366 = sadd.s32 %s364, %s365
      %s367 = smul.addr %s366, 8
      %s368 = scalar_lea.vmem %s10, %s367
      %p369 = scmp.lt.s32.totalorder %s25, 1
      %s370 = scalar_select %p369, %s25, 1
      %s371 = smul.addr %s370, 32
      %s372 = smul.addr %s371, 8
      %s373 = scalar_lea.vmem %s0, %s372
      %s374 = smul.u32 4, %s26
      %p375 = scmp.lt.s32.totalorder %s25, 1
      %s376 = scalar_select %p375, %s25, 1
      %p377 = scmp.lt.s32.totalorder %s374, 15
      %s378 = scalar_select %p377, %s374, 15
      %s379 = smul.addr %s378, 2
      %s380 = smul.addr %s376, 32
      %s381 = sadd.s32 %s379, %s380
      %s382 = smul.addr %s381, 8
      %s383 = scalar_lea.vmem %s10, %s382
      %s384 = smul.u32 4, %s26
      %p385 = scmp.eq.s32.totalorder %s26, 0
      // Predicated region
      $region61: #{tpu_custom_call.1} parent=59 // pred_check
        %p386 = pneg %p385
      $region62: #{tpu_custom_call.1} parent=59 // pred_check_branch
        %388 = sbr.rel (%p386) target = $region64
      $region63: #{tpu_custom_call.1} parent=59 // pred_region
        %vm389 = vcmask 130048
        %390 = vst.msk [vmem:[#allocation2] sm:$0xff] %vm389, 0.0
        %391 = vst.msk [vmem:[#allocation2 + $0x8] sm:$0xff] %vm389, 0.0
        %392 = vst.msk [vmem:[#allocation2 + $0x10] sm:$0xff] %vm389, 0.0
        %vm393 = vcmask 122880
        %394 = vst.msk [vmem:[#allocation2 + $0x18] sm:$0x1] %vm393, 0.0
        %s395 = scalar_lea.vmem [#allocation2], 544
        %396 = vst.msk [vmem:[%s395] sm:$0xff] %vm389, 0.0
        %397 = vst.msk [vmem:[%s395 + $0x8] sm:$0xff] %vm389, 0.0
        %398 = vst.msk [vmem:[%s395 + $0x10] sm:$0xff] %vm389, 0.0
        %399 = vst.msk [vmem:[%s395 + $0x18] sm:$0x1] %vm393, 0.0
        %400 = vst.msk [vmem:[#allocation2 + $0x7] sm:$0x1] %vm393, 0.0
        %401 = vst.msk [vmem:[#allocation2 + $0x27] sm:$0x1] %vm393, 0.0
        %402 = vst.msk [vmem:[#allocation2 + $0x47] sm:$0x1] %vm393, 0.0
        %403 = vst.msk [vmem:[#allocation2 + $0x67] sm:$0x1] %vm393, 0.0
        %404 = vst.msk [vmem:[#allocation2 + $0x87] sm:$0x1] %vm393, 0.0
        %405 = vst.msk [vmem:[#allocation2 + $0xa7] sm:$0x1] %vm393, 0.0
        %406 = vst.msk [vmem:[#allocation2 + $0xc7] sm:$0x1] %vm393, 0.0
        %407 = vst.msk [vmem:[#allocation2 + $0xe7] sm:$0x1] %vm393, 0.0
        %408 = vst.msk [vmem:[#allocation2 + $0x107] sm:$0x1] %vm393, 0.0
        %409 = vst.msk [vmem:[#allocation2 + $0x127] sm:$0x1] %vm393, 0.0
        %410 = vst.msk [vmem:[#allocation2 + $0x147] sm:$0x1] %vm393, 0.0
        %411 = vst.msk [vmem:[#allocation2 + $0x167] sm:$0x1] %vm393, 0.0
        %412 = vst.msk [vmem:[#allocation2 + $0x187] sm:$0x1] %vm393, 0.0
        %413 = vst.msk [vmem:[#allocation2 + $0x1a7] sm:$0x1] %vm393, 0.0
        %414 = vst.msk [vmem:[#allocation2 + $0x1c7] sm:$0x1] %vm393, 0.0
        %415 = vst.msk [vmem:[#allocation2 + $0x1e7] sm:$0x1] %vm393, 0.0
        %416 = vst.msk [vmem:[#allocation2 + $0x207] sm:$0x1] %vm393, 0.0
        %417 = vst.msk [vmem:[#allocation2 + $0x227] sm:$0x1] %vm393, 0.0
        %418 = vst.msk [vmem:[#allocation2 + $0x18] sm:$0x1] %vm393, 0.0
        %419 = vst.msk [vmem:[#allocation2 + $0x38] sm:$0x1] %vm393, 0.0
        %420 = vst.msk [vmem:[#allocation2 + $0x58] sm:$0x1] %vm393, 0.0
        %421 = vst.msk [vmem:[#allocation2 + $0x78] sm:$0x1] %vm393, 0.0
        %422 = vst.msk [vmem:[#allocation2 + $0x98] sm:$0x1] %vm393, 0.0
        %423 = vst.msk [vmem:[#allocation2 + $0xb8] sm:$0x1] %vm393, 0.0
        %424 = vst.msk [vmem:[#allocation2 + $0xd8] sm:$0x1] %vm393, 0.0
        %425 = vst.msk [vmem:[#allocation2 + $0xf8] sm:$0x1] %vm393, 0.0
        %426 = vst.msk [vmem:[#allocation2 + $0x118] sm:$0x1] %vm393, 0.0
        %427 = vst.msk [vmem:[#allocation2 + $0x138] sm:$0x1] %vm393, 0.0
        %428 = vst.msk [vmem:[#allocation2 + $0x158] sm:$0x1] %vm393, 0.0
        %429 = vst.msk [vmem:[#allocation2 + $0x178] sm:$0x1] %vm393, 0.0
        %430 = vst.msk [vmem:[#allocation2 + $0x198] sm:$0x1] %vm393, 0.0
        %431 = vst.msk [vmem:[#allocation2 + $0x1b8] sm:$0x1] %vm393, 0.0
        %432 = vst.msk [vmem:[#allocation2 + $0x1d8] sm:$0x1] %vm393, 0.0
        %433 = vst.msk [vmem:[#allocation2 + $0x1f8] sm:$0x1] %vm393, 0.0
        %434 = vst.msk [vmem:[#allocation2 + $0x218] sm:$0x1] %vm393, 0.0
        %435 = vst.msk [vmem:[#allocation2 + $0x238] sm:$0x1] %vm393, 0.0
      $region64: #{tpu_custom_call.1} parent=59 // pred_fallthru
        _
      %s436 = smul.u32 %s26, 4
      %p437 = scmp.lt.s32.totalorder %s436, 11
      %s438 = scalar_select %p437, %s436, 11
      %s439 = smul.u32 %s438, 16
      %s440 = scalar_lea.vmem %s373, %s439
      %v441 = vld [vmem:[%s440] sm:$0xff]
      %v442 = vld [vmem:[%s440 + $0x8] sm:$0xff]
      %v443 = vld [vmem:[%s440 + $0x10] sm:$0xff]
      %v444 = vld [vmem:[%s440 + $0x18] sm:$0xff]
      %v445 = vld [vmem:[%s440 + $0x20] sm:$0xff]
      %v446 = vld [vmem:[%s440 + $0x28] sm:$0xff]
      %v447 = vld [vmem:[%s440 + $0x30] sm:$0xff]
      %v448 = vld [vmem:[%s440 + $0x38] sm:$0xff]
      %v449 = vld [vmem:[%s440 + $0x40] sm:$0xff]
      %v450 = vld [vmem:[%s440 + $0x48] sm:$0xff]
      %v451 = vld [vmem:[%s1] sm:$0xf]
      %vm452 = vcmask 31744
      %v454 = vsel %vm452, %v441, 0
      %v457 = vsel %vm452, %v442, 0
      %v460 = vsel %vm452, %v443, 0
      %v463 = vsel %vm452, %v444, 0
      %v466 = vsel %vm452, %v445, 0
      %v469 = vsel %vm452, %v446, 0
      %v472 = vsel %vm452, %v447, 0
      %v475 = vsel %vm452, %v448, 0
      %v478 = vsel %vm452, %v449, 0
      %v481 = vsel %vm452, %v450, 0
      %vm483 = vcmask 1043456
      %v485 = vsel %vm483, %v451, 0
      %487 = vmatprep.subr.mxu0 0.0
      %488 = vmatpush1.msra.mxu0 %v485
      %489 = vmatprep.subr.mxu0 0.0
      %490 = vmatpush1.msra.mxu0 0.0
      %491 = vmatprep.subr.mxu0 0.0
      %492 = vmatpush1.msra.mxu0 0.0
      %493 = vmatprep.subr.mxu0 0.0
      %494 = vmatpush1.msra.mxu0 0.0
      %495 = vmatprep.subr.mxu0 0.0
      %496 = vmatpush1.msra.mxu0 0.0
      %497 = vmatprep.subr.mxu0 0.0
      %498 = vmatpush1.msra.mxu0 0.0
      %499 = vmatprep.subr.mxu0 0.0
      %500 = vmatpush1.msra.mxu0 0.0
      %501 = vmatprep.subr.mxu0 0.0
      %502 = vmatpush1.msra.mxu0 0.0
      %503 = vmatprep.subr.mxu0 0.0
      %504 = vmatpush1.msra.mxu0 0.0
      %505 = vmatprep.subr.mxu0 0.0
      %506 = vmatpush1.msra.mxu0 0.0
      %507 = vmatprep.subr.mxu0 0.0
      %508 = vmatpush1.msra.mxu0 0.0
      %509 = vmatprep.subr.mxu0 0.0
      %510 = vmatpush1.msra.mxu0 0.0
      %511 = vmatprep.subr.mxu0 0.0
      %512 = vmatpush1.msra.mxu0 0.0
      %513 = vmatprep.subr.mxu0 0.0
      %514 = vmatpush1.msra.mxu0 0.0
      %515 = vmatprep.subr.mxu0 0.0
      %516 = vmatpush1.msra.mxu0 0.0
      %517 = vmatprep.subr.mxu0 0.0
      %518 = vmatpush1.msra.mxu0 0.0
      %519 = vmatprep.subr.mxu0 0.0
      %520 = vmatpush1.msra.mxu0 0.0
      %521 = vmatprep.subr.mxu0 0.0
      %522 = vmatpush1.msra.mxu0 0.0
      %523 = vmatprep.subr.mxu0 0.0
      %524 = vmatpush1.msra.mxu0 0.0
      %525 = vmatprep.subr.mxu0 0.0
      %526 = vmatpush1.msra.mxu0 0.0
      %527 = vmatprep.subr.mxu0 0.0
      %528 = vmatpush1.msra.mxu0 0.0
      %529 = vmatprep.subr.mxu0 0.0
      %530 = vmatpush1.msra.mxu0 0.0
      %531 = vmatprep.subr.mxu0 0.0
      %532 = vmatpush1.msra.mxu0 0.0
      %533 = vmatprep.subr.mxu0 0.0
      %534 = vmatpush1.msra.mxu0 0.0
      %535 = vmatprep.subr.mxu0 0.0
      %536 = vmatpush1.msra.mxu0 0.0
      %537 = vmatprep.subr.mxu0 0.0
      %538 = vmatpush1.msra.mxu0 0.0
      %539 = vmatprep.subr.mxu0 0.0
      %540 = vmatpush1.msra.mxu0 0.0
      %541 = vmatprep.subr.mxu0 0.0
      %542 = vmatpush1.msra.mxu0 0.0
      %543 = vmatprep.subr.mxu0 0.0
      %544 = vmatpush1.msra.mxu0 0.0
      %545 = vmatprep.subr.mxu0 0.0
      %546 = vmatpush1.msra.mxu0 0.0
      %547 = vmatprep.subr.mxu0 0.0
      %548 = vmatpush1.msra.mxu0 0.0
      %549 = vmatprep.subr.mxu0 0.0
      %550 = vmatpush1.msra.mxu0 0.0
      %551 = vmatprep.mubr.f32.mxu0 0.0
      %552 = vmatmul.mubr.f32.gmra.mrb[0].mxu0 %v454
      %v553 = vpop.f32.mrb[0].mxu0
      %v554 = vadd.f32 0.0, %v553
      %v555 = vpop.f32.mrb[0].mxu0
      %556 = vmatprep.mubr.f32.mxu0 0.0
      %557 = vmatmul.mubr.f32.gmra.mrb[0].mxu0 %v457
      %v558 = vpop.f32.mrb[0].mxu0
      %v559 = vadd.f32 0.0, %v558
      %v560 = vpop.f32.mrb[0].mxu0
      %561 = vmatprep.mubr.f32.mxu0 0.0
      %562 = vmatmul.mubr.f32.gmra.mrb[0].mxu0 %v460
      %v563 = vpop.f32.mrb[0].mxu0
      %v564 = vadd.f32 0.0, %v563
      %v565 = vpop.f32.mrb[0].mxu0
      %566 = vmatprep.mubr.f32.mxu0 0.0
      %567 = vmatmul.mubr.f32.gmra.mrb[0].mxu0 %v463
      %v568 = vpop.f32.mrb[0].mxu0
      %v569 = vadd.f32 0.0, %v568
      %v570 = vpop.f32.mrb[0].mxu0
      %571 = vmatprep.mubr.f32.mxu0 0.0
      %572 = vmatmul.mubr.f32.gmra.mrb[0].mxu0 %v466
      %v573 = vpop.f32.mrb[0].mxu0
      %v574 = vadd.f32 0.0, %v573
      %v575 = vpop.f32.mrb[0].mxu0
      %576 = vmatprep.mubr.f32.mxu0 0.0
      %577 = vmatmul.mubr.f32.gmra.mrb[0].mxu0 %v469
      %v578 = vpop.f32.mrb[0].mxu0
      %v579 = vadd.f32 0.0, %v578
      %v580 = vpop.f32.mrb[0].mxu0
      %581 = vmatprep.mubr.f32.mxu0 0.0
      %582 = vmatmul.mubr.f32.gmra.mrb[0].mxu0 %v472
      %v583 = vpop.f32.mrb[0].mxu0
      %v584 = vadd.f32 0.0, %v583
      %v585 = vpop.f32.mrb[0].mxu0
      %586 = vmatprep.mubr.f32.mxu0 0.0
      %587 = vmatmul.mubr.f32.gmra.mrb[0].mxu0 %v475
      %v588 = vpop.f32.mrb[0].mxu0
      %v589 = vadd.f32 0.0, %v588
      %v590 = vpop.f32.mrb[0].mxu0
      %591 = vmatprep.mubr.f32.mxu0 0.0
      %592 = vmatmul.mubr.f32.gmra.mrb[0].mxu0 %v478
      %v593 = vpop.f32.mrb[0].mxu0
      %v594 = vadd.f32 0.0, %v593
      %v595 = vpop.f32.mrb[0].mxu0
      %596 = vmatprep.mubr.f32.mxu0 0.0
      %597 = vmatmul.mubr.f32.gmra.mrb[0].mxu0 %v481
      %v598 = vpop.f32.mrb[0].mxu0
      %v599 = vadd.f32 0.0, %v598
      %v600 = vpop.f32.mrb[0].mxu0
      %601 = vdwg.mxu0
      %v602 = vld [vmem:[%s2] sm:$0x1]
      %v604 = vlaneseq
      %v605 = vshrl.u32 %v604, 7
      %v606 = vsub.s32 0, %v605
      %v607 = vrot.slane %v602, %v606
      %v609 = vmul.f32 %v554, %v607
      %v610 = vmul.f32 %v559, %v607
      %v611 = vmul.f32 %v564, %v607
      %v612 = vmul.f32 %v569, %v607
      %v613 = vmul.f32 %v574, %v607
      %v614 = vmul.f32 %v579, %v607
      %v615 = vmul.f32 %v584, %v607
      %v616 = vmul.f32 %v589, %v607
      %v617 = vmul.f32 %v594, %v607
      %v618 = vmul.f32 %v599, %v607
      %v619 = vld [vmem:[%s3] sm:$0x1]
      %v621 = vlaneseq
      %v622 = vshrl.u32 %v621, 7
      %v623 = vsub.s32 0, %v622
      %v624 = vrot.slane %v619, %v623
      %v626 = vadd.f32 %v609, %v624
      %v627 = vadd.f32 %v610, %v624
      %v628 = vadd.f32 %v611, %v624
      %v629 = vadd.f32 %v612, %v624
      %v630 = vadd.f32 %v613, %v624
      %v631 = vadd.f32 %v614, %v624
      %v632 = vadd.f32 %v615, %v624
      %v633 = vadd.f32 %v616, %v624
      %v634 = vadd.f32 %v617, %v624
      %v635 = vadd.f32 %v618, %v624
      %v636 = vmax.f32 %v626, 0.0
      %v637 = vmax.f32 %v627, 0.0
      %v638 = vmax.f32 %v628, 0.0
      %v639 = vmax.f32 %v629, 0.0
      %v640 = vmax.f32 %v630, 0.0
      %v641 = vmax.f32 %v631, 0.0
      %v642 = vmax.f32 %v632, 0.0
      %v643 = vmax.f32 %v633, 0.0
      %v644 = vmax.f32 %v634, 0.0
      %v645 = vmax.f32 %v635, 0.0
      %v646 = vmin.f32 %v636, 6.0
      %v647 = vmin.f32 %v637, 6.0
      %v648 = vmin.f32 %v638, 6.0
      %v649 = vmin.f32 %v639, 6.0
      %v650 = vmin.f32 %v640, 6.0
      %v651 = vmin.f32 %v641, 6.0
      %v652 = vmin.f32 %v642, 6.0
      %v653 = vmin.f32 %v643, 6.0
      %v654 = vmin.f32 %v644, 6.0
      %v655 = vmin.f32 %v645, 6.0
      %s656 = sadd.s32 %s438, 1
      %s657 = smul.u32 %s656, 32
      %s658 = scalar_lea.vmem [#allocation2], %s657
      %vm659 = vcmask 130048
      %660 = vst.msk [vmem:[%s658 + $0x8] sm:$0xff] %vm659, %v646
      %661 = vst.msk [vmem:[%s658 + $0x10] sm:$0xff] %vm659, %v647
      %662 = vst.msk [vmem:[%s658 + $0x28] sm:$0xff] %vm659, %v648
      %663 = vst.msk [vmem:[%s658 + $0x30] sm:$0xff] %vm659, %v649
      %664 = vst.msk [vmem:[%s658 + $0x48] sm:$0xff] %vm659, %v650
      %665 = vst.msk [vmem:[%s658 + $0x50] sm:$0xff] %vm659, %v651
      %666 = vst.msk [vmem:[%s658 + $0x68] sm:$0xff] %vm659, %v652
      %667 = vst.msk [vmem:[%s658 + $0x70] sm:$0xff] %vm659, %v653
      %668 = vst.msk [vmem:[%s658 + $0x88] sm:$0xff] %vm659, %v654
      %669 = vst.msk [vmem:[%s658 + $0x90] sm:$0xff] %vm659, %v655
      %v670 = vld [vmem:[%s4] sm:$0xff]
      %v671 = vld [vmem:[%s4 + $0x8] sm:$0x1]
      %v672 = vld [vmem:[%s5] sm:$0x1]
      %v673 = vld [vmem:[%s6] sm:$0x1]
      %s674 = smul.u32 %s436, 32
      %s675 = scalar_lea.vmem [#allocation2], %s674
      %v676 = vld [vmem:[%s675 + $0x7] sm:$0xff]
      %v677 = vld [vmem:[%s675 + $0xf] sm:$0xff]
      %v678 = vld [vmem:[%s675 + $0x17] sm:$0x3]
      %v679 = vld [vmem:[%s675 + $0x27] sm:$0xff]
      %v680 = vld [vmem:[%s675 + $0x2f] sm:$0xff]
      %v681 = vld [vmem:[%s675 + $0x37] sm:$0x3]
      %v682 = vld [vmem:[%s675 + $0x47] sm:$0xff]
      %v683 = vld [vmem:[%s675 + $0x4f] sm:$0xff]
      %v684 = vld [vmem:[%s675 + $0x57] sm:$0x3]
      %v685 = vld [vmem:[%s675 + $0x67] sm:$0xff]
      %v686 = vld [vmem:[%s675 + $0x6f] sm:$0xff]
      %v687 = vld [vmem:[%s675 + $0x77] sm:$0x3]
      %v688 = vld [vmem:[%s675 + $0x87] sm:$0xff]
      %v689 = vld [vmem:[%s675 + $0x8f] sm:$0xff]
      %v690 = vld [vmem:[%s675 + $0x97] sm:$0x3]
      %v691 = vld [vmem:[%s675 + $0xa7] sm:$0xff]
      %v692 = vld [vmem:[%s675 + $0xaf] sm:$0xff]
      %v693 = vld [vmem:[%s675 + $0xb7] sm:$0x3]
      %v694 = vlaneseq
      %v695 = vshrl.u32 %v694, 7
      %v696 = vsub.s32 0, %v695
      %v697 = vrot.slane %v670, %v696
      %v698 = vmul.f32 %v676, %v697
      %v699 = vmul.f32 %v677, %v697
      %v700 = vmul.f32 %v679, %v697
      %v701 = vmul.f32 %v680, %v697
      %v702 = vmul.f32 %v682, %v697
      %v703 = vmul.f32 %v683, %v697
      %v704 = vmul.f32 %v685, %v697
      %v705 = vmul.f32 %v686, %v697
      %v706 = vlaneseq
      %v707 = vshrl.u32 %v706, 7
      %v708 = vsub.s32 1, %v707
      %v709 = vrot.slane %v670, %v708
      %v710 = vmul.f32 %v676, %v709
      %v711 = vmul.f32 %v677, %v709
      %v712 = vmul.f32 %v678, %v709
      %v713 = vmul.f32 %v679, %v709
      %v714 = vmul.f32 %v680, %v709
      %v715 = vmul.f32 %v681, %v709
      %v716 = vmul.f32 %v682, %v709
      %v717 = vmul.f32 %v683, %v709
      %v718 = vmul.f32 %v684, %v709
      %v719 = vmul.f32 %v685, %v709
      %v720 = vmul.f32 %v686, %v709
      %v721 = vmul.f32 %v687, %v709
      %vm734 = vcmask 1046528
      %v735 = vrot.slane %v710, 1
      %v736 = vrot.slane %v711, 1
      %v737 = vsel %vm734, %v735, %v736
      %v738 = vrot.slane %v712, 1
      %v739 = vsel %vm734, %v736, %v738
      %v740 = vrot.slane %v713, 1
      %v741 = vrot.slane %v714, 1
      %v742 = vsel %vm734, %v740, %v741
      %v743 = vrot.slane %v715, 1
      %v744 = vsel %vm734, %v741, %v743
      %v745 = vrot.slane %v716, 1
      %v746 = vrot.slane %v717, 1
      %v747 = vsel %vm734, %v745, %v746
      %v748 = vrot.slane %v718, 1
      %v749 = vsel %vm734, %v746, %v748
      %v750 = vrot.slane %v719, 1
      %v751 = vrot.slane %v720, 1
      %v752 = vsel %vm734, %v750, %v751
      %v753 = vrot.slane %v721, 1
      %v754 = vsel %vm734, %v751, %v753
      %v763 = vadd.f32 %v698, %v737
      %v764 = vadd.f32 %v699, %v739
      %v765 = vadd.f32 %v700, %v742
      %v766 = vadd.f32 %v701, %v744
      %v767 = vadd.f32 %v702, %v747
      %v768 = vadd.f32 %v703, %v749
      %v769 = vadd.f32 %v704, %v752
      %v770 = vadd.f32 %v705, %v754
      %v771 = vlaneseq
      %v772 = vshrl.u32 %v771, 7
      %v773 = vsub.s32 2, %v772
      %v774 = vrot.slane %v670, %v773
      %v775 = vmul.f32 %v676, %v774
      %v776 = vmul.f32 %v677, %v774
      %v777 = vmul.f32 %v678, %v774
      %v778 = vmul.f32 %v679, %v774
      %v779 = vmul.f32 %v680, %v774
      %v780 = vmul.f32 %v681, %v774
      %v781 = vmul.f32 %v682, %v774
      %v782 = vmul.f32 %v683, %v774
      %v783 = vmul.f32 %v684, %v774
      %v784 = vmul.f32 %v685, %v774
      %v785 = vmul.f32 %v686, %v774
      %v786 = vmul.f32 %v687, %v774
      %vm799 = vcmask 1045504
      %v800 = vrot.slane %v775, 2
      %v801 = vrot.slane %v776, 2
      %v802 = vsel %vm799, %v800, %v801
      %v803 = vrot.slane %v777, 2
      %v804 = vsel %vm799, %v801, %v803
      %v805 = vrot.slane %v778, 2
      %v806 = vrot.slane %v779, 2
      %v807 = vsel %vm799, %v805, %v806
      %v808 = vrot.slane %v780, 2
      %v809 = vsel %vm799, %v806, %v808
      %v810 = vrot.slane %v781, 2
      %v811 = vrot.slane %v782, 2
      %v812 = vsel %vm799, %v810, %v811
      %v813 = vrot.slane %v783, 2
      %v814 = vsel %vm799, %v811, %v813
      %v815 = vrot.slane %v784, 2
      %v816 = vrot.slane %v785, 2
      %v817 = vsel %vm799, %v815, %v816
      %v818 = vrot.slane %v786, 2
      %v819 = vsel %vm799, %v816, %v818
      %v828 = vadd.f32 %v763, %v802
      %v829 = vadd.f32 %v764, %v804
      %v830 = vadd.f32 %v765, %v807
      %v831 = vadd.f32 %v766, %v809
      %v832 = vadd.f32 %v767, %v812
      %v833 = vadd.f32 %v768, %v814
      %v834 = vadd.f32 %v769, %v817
      %v835 = vadd.f32 %v770, %v819
      %v836 = vlaneseq
      %v837 = vshrl.u32 %v836, 7
      %v838 = vsub.s32 3, %v837
      %v839 = vrot.slane %v670, %v838
      %v840 = vmul.f32 %v679, %v839
      %v841 = vmul.f32 %v680, %v839
      %v842 = vmul.f32 %v682, %v839
      %v843 = vmul.f32 %v683, %v839
      %v844 = vmul.f32 %v685, %v839
      %v845 = vmul.f32 %v686, %v839
      %v846 = vmul.f32 %v688, %v839
      %v847 = vmul.f32 %v689, %v839
      %v848 = vadd.f32 %v828, %v840
      %v849 = vadd.f32 %v829, %v841
      %v850 = vadd.f32 %v830, %v842
      %v851 = vadd.f32 %v831, %v843
      %v852 = vadd.f32 %v832, %v844
      %v853 = vadd.f32 %v833, %v845
      %v854 = vadd.f32 %v834, %v846
      %v855 = vadd.f32 %v835, %v847
      %v856 = vlaneseq
      %v857 = vshrl.u32 %v856, 7
      %v858 = vsub.s32 4, %v857
      %v859 = vrot.slane %v670, %v858
      %v860 = vmul.f32 %v679, %v859
      %v861 = vmul.f32 %v680, %v859
      %v862 = vmul.f32 %v681, %v859
      %v863 = vmul.f32 %v682, %v859
      %v864 = vmul.f32 %v683, %v859
      %v865 = vmul.f32 %v684, %v859
      %v866 = vmul.f32 %v685, %v859
      %v867 = vmul.f32 %v686, %v859
      %v868 = vmul.f32 %v687, %v859
      %v869 = vmul.f32 %v688, %v859
      %v870 = vmul.f32 %v689, %v859
      %v871 = vmul.f32 %v690, %v859
      %v884 = vrot.slane %v860, 1
      %v885 = vrot.slane %v861, 1
      %v886 = vsel %vm734, %v884, %v885
      %v887 = vrot.slane %v862, 1
      %v888 = vsel %vm734, %v885, %v887
      %v889 = vrot.slane %v863, 1
      %v890 = vrot.slane %v864, 1
      %v891 = vsel %vm734, %v889, %v890
      %v892 = vrot.slane %v865, 1
      %v893 = vsel %vm734, %v890, %v892
      %v894 = vrot.slane %v866, 1
      %v895 = vrot.slane %v867, 1
      %v896 = vsel %vm734, %v894, %v895
      %v897 = vrot.slane %v868, 1
      %v898 = vsel %vm734, %v895, %v897
      %v899 = vrot.slane %v869, 1
      %v900 = vrot.slane %v870, 1
      %v901 = vsel %vm734, %v899, %v900
      %v902 = vrot.slane %v871, 1
      %v903 = vsel %vm734, %v900, %v902
      %v912 = vadd.f32 %v848, %v886
      %v913 = vadd.f32 %v849, %v888
      %v914 = vadd.f32 %v850, %v891
      %v915 = vadd.f32 %v851, %v893
      %v916 = vadd.f32 %v852, %v896
      %v917 = vadd.f32 %v853, %v898
      %v918 = vadd.f32 %v854, %v901
      %v919 = vadd.f32 %v855, %v903
      %v920 = vlaneseq
      %v921 = vshrl.u32 %v920, 7
      %v922 = vsub.s32 5, %v921
      %v923 = vrot.slane %v670, %v922
      %v924 = vmul.f32 %v679, %v923
      %v925 = vmul.f32 %v680, %v923
      %v926 = vmul.f32 %v681, %v923
      %v927 = vmul.f32 %v682, %v923
      %v928 = vmul.f32 %v683, %v923
      %v929 = vmul.f32 %v684, %v923
      %v930 = vmul.f32 %v685, %v923
      %v931 = vmul.f32 %v686, %v923
      %v932 = vmul.f32 %v687, %v923
      %v933 = vmul.f32 %v688, %v923
      %v934 = vmul.f32 %v689, %v923
      %v935 = vmul.f32 %v690, %v923
      %v948 = vrot.slane %v924, 2
      %v949 = vrot.slane %v925, 2
      %v950 = vsel %vm799, %v948, %v949
      %v951 = vrot.slane %v926, 2
      %v952 = vsel %vm799, %v949, %v951
      %v953 = vrot.slane %v927, 2
      %v954 = vrot.slane %v928, 2
      %v955 = vsel %vm799, %v953, %v954
      %v956 = vrot.slane %v929, 2
      %v957 = vsel %vm799, %v954, %v956
      %v958 = vrot.slane %v930, 2
      %v959 = vrot.slane %v931, 2
      %v960 = vsel %vm799, %v958, %v959
      %v961 = vrot.slane %v932, 2
      %v962 = vsel %vm799, %v959, %v961
      %v963 = vrot.slane %v933, 2
      %v964 = vrot.slane %v934, 2
      %v965 = vsel %vm799, %v963, %v964
      %v966 = vrot.slane %v935, 2
      %v967 = vsel %vm799, %v964, %v966
      %v976 = vadd.f32 %v912, %v950
      %v977 = vadd.f32 %v913, %v952
      %v978 = vadd.f32 %v914, %v955
      %v979 = vadd.f32 %v915, %v957
      %v980 = vadd.f32 %v916, %v960
      %v981 = vadd.f32 %v917, %v962
      %v982 = vadd.f32 %v918, %v965
      %v983 = vadd.f32 %v919, %v967
      %v984 = vlaneseq
      %v985 = vshrl.u32 %v984, 7
      %v986 = vsub.s32 6, %v985
      %v987 = vrot.slane %v670, %v986
      %v988 = vmul.f32 %v682, %v987
      %v989 = vmul.f32 %v683, %v987
      %v990 = vmul.f32 %v685, %v987
      %v991 = vmul.f32 %v686, %v987
      %v992 = vmul.f32 %v688, %v987
      %v993 = vmul.f32 %v689, %v987
      %v994 = vmul.f32 %v691, %v987
      %v995 = vmul.f32 %v692, %v987
      %v996 = vadd.f32 %v976, %v988
      %v997 = vadd.f32 %v977, %v989
      %v998 = vadd.f32 %v978, %v990
      %v999 = vadd.f32 %v979, %v991
      %v1000 = vadd.f32 %v980, %v992
      %v1001 = vadd.f32 %v981, %v993
      %v1002 = vadd.f32 %v982, %v994
      %v1003 = vadd.f32 %v983, %v995
      %v1004 = vlaneseq
      %v1005 = vshrl.u32 %v1004, 7
      %v1006 = vsub.s32 7, %v1005
      %v1007 = vrot.slane %v670, %v1006
      %v1008 = vmul.f32 %v682, %v1007
      %v1009 = vmul.f32 %v683, %v1007
      %v1010 = vmul.f32 %v684, %v1007
      %v1011 = vmul.f32 %v685, %v1007
      %v1012 = vmul.f32 %v686, %v1007
      %v1013 = vmul.f32 %v687, %v1007
      %v1014 = vmul.f32 %v688, %v1007
      %v1015 = vmul.f32 %v689, %v1007
      %v1016 = vmul.f32 %v690, %v1007
      %v1017 = vmul.f32 %v691, %v1007
      %v1018 = vmul.f32 %v692, %v1007
      %v1019 = vmul.f32 %v693, %v1007
      %v1032 = vrot.slane %v1008, 1
      %v1033 = vrot.slane %v1009, 1
      %v1034 = vsel %vm734, %v1032, %v1033
      %v1035 = vrot.slane %v1010, 1
      %v1036 = vsel %vm734, %v1033, %v1035
      %v1037 = vrot.slane %v1011, 1
      %v1038 = vrot.slane %v1012, 1
      %v1039 = vsel %vm734, %v1037, %v1038
      %v1040 = vrot.slane %v1013, 1
      %v1041 = vsel %vm734, %v1038, %v1040
      %v1042 = vrot.slane %v1014, 1
      %v1043 = vrot.slane %v1015, 1
      %v1044 = vsel %vm734, %v1042, %v1043
      %v1045 = vrot.slane %v1016, 1
      %v1046 = vsel %vm734, %v1043, %v1045
      %v1047 = vrot.slane %v1017, 1
      %v1048 = vrot.slane %v1018, 1
      %v1049 = vsel %vm734, %v1047, %v1048
      %v1050 = vrot.slane %v1019, 1
      %v1051 = vsel %vm734, %v1048, %v1050
      %v1060 = vadd.f32 %v996, %v1034
      %v1061 = vadd.f32 %v997, %v1036
      %v1062 = vadd.f32 %v998, %v1039
      %v1063 = vadd.f32 %v999, %v1041
      %v1064 = vadd.f32 %v1000, %v1044
      %v1065 = vadd.f32 %v1001, %v1046
      %v1066 = vadd.f32 %v1002, %v1049
      %v1067 = vadd.f32 %v1003, %v1051
      %v1068 = vlaneseq
      %v1069 = vshrl.u32 %v1068, 7
      %v1070 = vsub.s32 0, %v1069
      %v1071 = vrot.slane %v671, %v1070
      %v1072 = vmul.f32 %v682, %v1071
      %v1073 = vmul.f32 %v683, %v1071
      %v1074 = vmul.f32 %v684, %v1071
      %v1075 = vmul.f32 %v685, %v1071
      %v1076 = vmul.f32 %v686, %v1071
      %v1077 = vmul.f32 %v687, %v1071
      %v1078 = vmul.f32 %v688, %v1071
      %v1079 = vmul.f32 %v689, %v1071
      %v1080 = vmul.f32 %v690, %v1071
      %v1081 = vmul.f32 %v691, %v1071
      %v1082 = vmul.f32 %v692, %v1071
      %v1083 = vmul.f32 %v693, %v1071
      %v1096 = vrot.slane %v1072, 2
      %v1097 = vrot.slane %v1073, 2
      %v1098 = vsel %vm799, %v1096, %v1097
      %v1099 = vrot.slane %v1074, 2
      %v1100 = vsel %vm799, %v1097, %v1099
      %v1101 = vrot.slane %v1075, 2
      %v1102 = vrot.slane %v1076, 2
      %v1103 = vsel %vm799, %v1101, %v1102
      %v1104 = vrot.slane %v1077, 2
      %v1105 = vsel %vm799, %v1102, %v1104
      %v1106 = vrot.slane %v1078, 2
      %v1107 = vrot.slane %v1079, 2
      %v1108 = vsel %vm799, %v1106, %v1107
      %v1109 = vrot.slane %v1080, 2
      %v1110 = vsel %vm799, %v1107, %v1109
      %v1111 = vrot.slane %v1081, 2
      %v1112 = vrot.slane %v1082, 2
      %v1113 = vsel %vm799, %v1111, %v1112
      %v1114 = vrot.slane %v1083, 2
      %v1115 = vsel %vm799, %v1112, %v1114
      %v1124 = vadd.f32 %v1060, %v1098
      %v1125 = vadd.f32 %v1061, %v1100
      %v1126 = vadd.f32 %v1062, %v1103
      %v1127 = vadd.f32 %v1063, %v1105
      %v1128 = vadd.f32 %v1064, %v1108
      %v1129 = vadd.f32 %v1065, %v1110
      %v1130 = vadd.f32 %v1066, %v1113
      %v1131 = vadd.f32 %v1067, %v1115
      %v1133 = vlaneseq
      %v1134 = vshrl.u32 %v1133, 7
      %v1135 = vsub.s32 0, %v1134
      %v1136 = vrot.slane %v672, %v1135
      %v1138 = vmul.f32 %v1124, %v1136
      %v1139 = vmul.f32 %v1125, %v1136
      %v1140 = vmul.f32 %v1126, %v1136
      %v1141 = vmul.f32 %v1127, %v1136
      %v1142 = vmul.f32 %v1128, %v1136
      %v1143 = vmul.f32 %v1129, %v1136
      %v1144 = vmul.f32 %v1130, %v1136
      %v1145 = vmul.f32 %v1131, %v1136
      %v1147 = vlaneseq
      %v1148 = vshrl.u32 %v1147, 7
      %v1149 = vsub.s32 0, %v1148
      %v1150 = vrot.slane %v673, %v1149
      %v1152 = vadd.f32 %v1138, %v1150
      %v1153 = vadd.f32 %v1139, %v1150
      %v1154 = vadd.f32 %v1140, %v1150
      %v1155 = vadd.f32 %v1141, %v1150
      %v1156 = vadd.f32 %v1142, %v1150
      %v1157 = vadd.f32 %v1143, %v1150
      %v1158 = vadd.f32 %v1144, %v1150
      %v1159 = vadd.f32 %v1145, %v1150
      %v1160 = vmax.f32 %v1152, 0.0
      %v1161 = vmax.f32 %v1153, 0.0
      %v1162 = vmax.f32 %v1154, 0.0
      %v1163 = vmax.f32 %v1155, 0.0
      %v1164 = vmax.f32 %v1156, 0.0
      %v1165 = vmax.f32 %v1157, 0.0
      %v1166 = vmax.f32 %v1158, 0.0
      %v1167 = vmax.f32 %v1159, 0.0
      %v1168 = vmin.f32 %v1160, 6.0
      %v1169 = vmin.f32 %v1161, 6.0
      %v1170 = vmin.f32 %v1162, 6.0
      %v1171 = vmin.f32 %v1163, 6.0
      %v1172 = vmin.f32 %v1164, 6.0
      %v1173 = vmin.f32 %v1165, 6.0
      %v1174 = vmin.f32 %v1166, 6.0
      %v1175 = vmin.f32 %v1167, 6.0
      %v1176 = vld [vmem:[%s7] sm:$0xff]
      %v1177 = vld [vmem:[%s7 + $0x8] sm:$0xff]
      %v1179 = vsel %vm659, %v1168, 0
      %v1182 = vsel %vm659, %v1169, 0
      %v1185 = vsel %vm659, %v1170, 0
      %v1188 = vsel %vm659, %v1171, 0
      %v1191 = vsel %vm659, %v1172, 0
      %v1194 = vsel %vm659, %v1173, 0
      %v1197 = vsel %vm659, %v1174, 0
      %v1200 = vsel %vm659, %v1175, 0
      %1202 = vmatprep.subr.mxu0 0.0
      %1203 = vmatpush1.msra.mxu0 %v1176
      %1204 = vmatprep.subr.mxu0 0.0
      %1205 = vmatpush1.msra.mxu0 %v1177
      %1206 = vmatprep.subr.mxu0 0.0
      %1207 = vmatpush1.msra.mxu0 0.0
      %1208 = vmatprep.subr.mxu0 0.0
      %1209 = vmatpush1.msra.mxu0 0.0
      %1210 = vmatprep.subr.mxu0 0.0
      %1211 = vmatpush1.msra.mxu0 0.0
      %1212 = vmatprep.subr.mxu0 0.0
      %1213 = vmatpush1.msra.mxu0 0.0
      %1214 = vmatprep.subr.mxu0 0.0
      %1215 = vmatpush1.msra.mxu0 0.0
      %1216 = vmatprep.subr.mxu0 0.0
      %1217 = vmatpush1.msra.mxu0 0.0
      %1218 = vmatprep.subr.mxu0 0.0
      %1219 = vmatpush1.msra.mxu0 0.0
      %1220 = vmatprep.subr.mxu0 0.0
      %1221 = vmatpush1.msra.mxu0 0.0
      %1222 = vmatprep.subr.mxu0 0.0
      %1223 = vmatpush1.msra.mxu0 0.0
      %1224 = vmatprep.subr.mxu0 0.0
      %1225 = vmatpush1.msra.mxu0 0.0
      %1226 = vmatprep.subr.mxu0 0.0
      %1227 = vmatpush1.msra.mxu0 0.0
      %1228 = vmatprep.subr.mxu0 0.0
      %1229 = vmatpush1.msra.mxu0 0.0
      %1230 = vmatprep.subr.mxu0 0.0
      %1231 = vmatpush1.msra.mxu0 0.0
      %1232 = vmatprep.subr.mxu0 0.0
      %1233 = vmatpush1.msra.mxu0 0.0
      %1234 = vmatprep.subr.mxu0 0.0
      %1235 = vmatpush1.msra.mxu0 0.0
      %1236 = vmatprep.subr.mxu0 0.0
      %1237 = vmatpush1.msra.mxu0 0.0
      %1238 = vmatprep.subr.mxu0 0.0
      %1239 = vmatpush1.msra.mxu0 0.0
      %1240 = vmatprep.subr.mxu0 0.0
      %1241 = vmatpush1.msra.mxu0 0.0
      %1242 = vmatprep.subr.mxu0 0.0
      %1243 = vmatpush1.msra.mxu0 0.0
      %1244 = vmatprep.subr.mxu0 0.0
      %1245 = vmatpush1.msra.mxu0 0.0
      %1246 = vmatprep.subr.mxu0 0.0
      %1247 = vmatpush1.msra.mxu0 0.0
      %1248 = vmatprep.subr.mxu0 0.0
      %1249 = vmatpush1.msra.mxu0 0.0
      %1250 = vmatprep.subr.mxu0 0.0
      %1251 = vmatpush1.msra.mxu0 0.0
      %1252 = vmatprep.subr.mxu0 0.0
      %1253 = vmatpush1.msra.mxu0 0.0
      %1254 = vmatprep.subr.mxu0 0.0
      %1255 = vmatpush1.msra.mxu0 0.0
      %1256 = vmatprep.subr.mxu0 0.0
      %1257 = vmatpush1.msra.mxu0 0.0
      %1258 = vmatprep.subr.mxu0 0.0
      %1259 = vmatpush1.msra.mxu0 0.0
      %1260 = vmatprep.subr.mxu0 0.0
      %1261 = vmatpush1.msra.mxu0 0.0
      %1262 = vmatprep.subr.mxu0 0.0
      %1263 = vmatpush1.msra.mxu0 0.0
      %1264 = vmatprep.subr.mxu0 0.0
      %1265 = vmatpush1.msra.mxu0 0.0
      %1266 = vmatprep.mubr.f32.mxu0 0.0
      %1267 = vmatmul.mubr.f32.gmra.mrb[0].mxu0 %v1179
      %v1268 = vpop.f32.mrb[0].mxu0
      %v1269 = vadd.f32 0.0, %v1268
      %v1270 = vpop.f32.mrb[0].mxu0
      %1271 = vmatprep.mubr.f32.mxu0 0.0
      %1272 = vmatmul.mubr.f32.gmra.mrb[0].mxu0 %v1182
      %v1273 = vpop.f32.mrb[0].mxu0
      %v1274 = vadd.f32 0.0, %v1273
      %v1275 = vpop.f32.mrb[0].mxu0
      %1276 = vmatprep.mubr.f32.mxu0 0.0
      %1277 = vmatmul.mubr.f32.gmra.mrb[0].mxu0 %v1185
      %v1278 = vpop.f32.mrb[0].mxu0
      %v1279 = vadd.f32 0.0, %v1278
      %v1280 = vpop.f32.mrb[0].mxu0
      %1281 = vmatprep.mubr.f32.mxu0 0.0
      %1282 = vmatmul.mubr.f32.gmra.mrb[0].mxu0 %v1188
      %v1283 = vpop.f32.mrb[0].mxu0
      %v1284 = vadd.f32 0.0, %v1283
      %v1285 = vpop.f32.mrb[0].mxu0
      %1286 = vmatprep.mubr.f32.mxu0 0.0
      %1287 = vmatmul.mubr.f32.gmra.mrb[0].mxu0 %v1191
      %v1288 = vpop.f32.mrb[0].mxu0
      %v1289 = vadd.f32 0.0, %v1288
      %v1290 = vpop.f32.mrb[0].mxu0
      %1291 = vmatprep.mubr.f32.mxu0 0.0
      %1292 = vmatmul.mubr.f32.gmra.mrb[0].mxu0 %v1194
      %v1293 = vpop.f32.mrb[0].mxu0
      %v1294 = vadd.f32 0.0, %v1293
      %v1295 = vpop.f32.mrb[0].mxu0
      %1296 = vmatprep.mubr.f32.mxu0 0.0
      %1297 = vmatmul.mubr.f32.gmra.mrb[0].mxu0 %v1197
      %v1298 = vpop.f32.mrb[0].mxu0
      %v1299 = vadd.f32 0.0, %v1298
      %v1300 = vpop.f32.mrb[0].mxu0
      %1301 = vmatprep.mubr.f32.mxu0 0.0
      %1302 = vmatmul.mubr.f32.gmra.mrb[0].mxu0 %v1200
      %v1303 = vpop.f32.mrb[0].mxu0
      %v1304 = vadd.f32 0.0, %v1303
      %v1305 = vpop.f32.mrb[0].mxu0
      %1306 = vdwg.mxu0
      %v1307 = vld [vmem:[%s8] sm:$0x1]
      %v1309 = vlaneseq
      %v1310 = vshrl.u32 %v1309, 7
      %v1311 = vsub.s32 0, %v1310
      %v1312 = vrot.slane %v1307, %v1311
      %v1314 = vmul.f32 %v1269, %v1312
      %v1315 = vmul.f32 %v1274, %v1312
      %v1316 = vmul.f32 %v1279, %v1312
      %v1317 = vmul.f32 %v1284, %v1312
      %v1318 = vmul.f32 %v1289, %v1312
      %v1319 = vmul.f32 %v1294, %v1312
      %v1320 = vmul.f32 %v1299, %v1312
      %v1321 = vmul.f32 %v1304, %v1312
      %v1322 = vld [vmem:[%s9] sm:$0x1]
      %v1324 = vlaneseq
      %v1325 = vshrl.u32 %v1324, 7
      %v1326 = vsub.s32 0, %v1325
      %v1327 = vrot.slane %v1322, %v1326
      %v1329 = vadd.f32 %v1314, %v1327
      %v1330 = vadd.f32 %v1315, %v1327
      %v1331 = vadd.f32 %v1316, %v1327
      %v1332 = vadd.f32 %v1317, %v1327
      %v1333 = vadd.f32 %v1318, %v1327
      %v1334 = vadd.f32 %v1319, %v1327
      %v1335 = vadd.f32 %v1320, %v1327
      %v1336 = vadd.f32 %v1321, %v1327
      %s1337 = smul.u32 %s436, 16
      %s1338 = scalar_lea.vmem %s373, %s1337
      %v1339 = vld [vmem:[%s1338] sm:$0xff]
      %v1340 = vld [vmem:[%s1338 + $0x8] sm:$0xff]
      %v1341 = vld [vmem:[%s1338 + $0x10] sm:$0xff]
      %v1342 = vld [vmem:[%s1338 + $0x18] sm:$0xff]
      %v1343 = vld [vmem:[%s1338 + $0x20] sm:$0xff]
      %v1344 = vld [vmem:[%s1338 + $0x28] sm:$0xff]
      %v1345 = vld [vmem:[%s1338 + $0x30] sm:$0xff]
      %v1346 = vld [vmem:[%s1338 + $0x38] sm:$0xff]
      %v1347 = vadd.f32 %v1329, %v1339
      %v1348 = vadd.f32 %v1330, %v1340
      %v1349 = vadd.f32 %v1331, %v1341
      %v1350 = vadd.f32 %v1332, %v1342
      %v1351 = vadd.f32 %v1333, %v1343
      %v1352 = vadd.f32 %v1334, %v1344
      %v1353 = vadd.f32 %v1335, %v1345
      %v1354 = vadd.f32 %v1336, %v1346
      %1355 = vst.msk [vmem:[%s383] sm:$0xff] %vm452, %v1347
      %1356 = vst.msk [vmem:[%s383 + $0x8] sm:$0xff] %vm452, %v1348
      %1357 = vst.msk [vmem:[%s383 + $0x10] sm:$0xff] %vm452, %v1349
      %1358 = vst.msk [vmem:[%s383 + $0x18] sm:$0xff] %vm452, %v1350
      %1359 = vst.msk [vmem:[%s383 + $0x20] sm:$0xff] %vm452, %v1351
      %1360 = vst.msk [vmem:[%s383 + $0x28] sm:$0xff] %vm452, %v1352
      %1361 = vst.msk [vmem:[%s383 + $0x30] sm:$0xff] %vm452, %v1353
      %1362 = vst.msk [vmem:[%s383 + $0x38] sm:$0xff] %vm452, %v1354
      %s1363 = smul.u32 4, %s26
      %p1364 = scmp.lt.s32.totalorder %s25, 1
      %s1365 = scalar_select %p1364, %s25, 1
      %p1366 = scmp.lt.s32.totalorder %s1363, 15
      %s1367 = scalar_select %p1366, %s1363, 15
      %s1368 = smul.addr %s1367, 2
      %s1369 = smul.addr %s1365, 32
      %s1370 = sadd.s32 %s1368, %s1369
      %s1371 = smul.addr %s1370, 8
      %s1372 = scalar_lea.vmem %s10, %s1371
      // Predicated region
      $region65: #{tpu_custom_call.1} parent=59 // pred_check
        %p1373 = pneg %p268
      $region66: #{tpu_custom_call.1} parent=59 // pred_check_branch
        %1375 = sbr.rel (%p1373) target = $region68
      $region67: #{tpu_custom_call.1} parent=59 // pred_region
        %s1376 = smul.u32 4, %s26
      $region68: #{tpu_custom_call.1} parent=59 // pred_fallthru
        _
    $region60: #{tpu_custom_call.1} parent=5 // pred_fallthru
      _
    %p1377 = scmp.le.s32.totalorder 2, %s16
    // Predicated region
    $region69: #{tpu_custom_call.1} parent=5 // pred_check
      %p1378 = pneg %p1377
    $region70: #{tpu_custom_call.1} parent=5 // pred_check_branch
      %1380 = sbr.rel (%p1378) target = $region72
    $region71: #{tpu_custom_call.1} parent=5 // pred_region
      %s1381 = ssub.s32 %s16, 2
      // Predicated region
      $region73: #{tpu_custom_call.1} parent=71 // pred_check
        %p1382 = pneg %p274
      $region74: #{tpu_custom_call.1} parent=71 // pred_check_branch
        %1384 = sbr.rel (%p1382) target = $region76
      $region75: #{tpu_custom_call.1} parent=71 // pred_region
        %s1385 = smul.u32 4, %s28
        %p1386 = scmp.lt.s32.totalorder %s27, 1
        %s1387 = scalar_select %p1386, %s27, 1
        %p1388 = scmp.lt.s32.totalorder %s1385, 15
        %s1389 = scalar_select %p1388, %s1385, 15
        %s1390 = smul.addr %s1389, 2
        %s1391 = smul.addr %s1387, 32
        %s1392 = sadd.s32 %s1390, %s1391
        %s1393 = smul.addr %s1392, 8
        %s1394 = scalar_lea.vmem %s10, %s1393
      $region76: #{tpu_custom_call.1} parent=71 // pred_fallthru
        _
    $region72: #{tpu_custom_call.1} parent=5 // pred_fallthru
      _
  $region6: #{tpu_custom_call.1} parent=0 // loop_footer
    %s20 = sadd.s32 1, %s16
  $region7: #{tpu_custom_call.1} parent=0 // loop_footer_branch
    %15 = sbr.rel target = $region3
  $region8: #{tpu_custom_call.1} parent=0 // loop_exit
    _

</llo_original>
